<compile_context>
chip_gen: v5e
topology: v5e:2x2
jax: 0.10.0
libtpu: 0.0.40
codegen_flags: <defaults>
</compile_context>

<pallas_src>
import functools

import jax
import jax.numpy as jnp
import numpy as np
from jax.experimental import pallas as pl
from jax.experimental.pallas import tpu as pltpu


def _sigmoid(v):
    # exp -> EUP; approx reciprocal -> EUP; clamp avoids exp overflow for very
    # negative logits (sigmoid(-30) is already ~1e-13 in f32).
    v = jnp.maximum(v, -30.0)
    return pl.reciprocal(1.0 + jnp.exp(-v), approx=True)


def _se_kernel(x_ref, w1t_ref, w2_ref, wmask_ref, o_ref, *, wdim, inv_hw, use_mxu):
    # x_ref:     (Nb, C, HWp)  VMEM   flattened feature maps (lane-dense)
    # w1t_ref:   (C, Csq)      VMEM   first 1x1 conv weight, transposed
    # w2_ref:    (C, Csq) [VPU path] or (Csq, C) [MXU path]
    # wmask_ref: (49, HWp)     VMEM   7x7 weights pre-masked per pixel (0 = OOB tap)
    # o_ref:     (Nb, C, HWp)  VMEM
    nb, c, hwp = x_ref.shape
    xv = x_ref[...]                                            # native dtype

    # ---- SE branch: global average pool + 1x1 conv MLP + sigmoid gate -------
    pooled = jnp.sum(xv, axis=2, keepdims=True, dtype=jnp.float32) * inv_hw  # (Nb,C,1)
    if use_mxu:
        h = jnp.dot(pooled[:, :, 0], w1t_ref[...],
                    preferred_element_type=jnp.float32)        # (Nb, Csq)
        h = jnp.maximum(h, 0.0)
        s = jnp.dot(h, w2_ref[...],
                    preferred_element_type=jnp.float32)        # (Nb, C)
        se = _sigmoid(s)[:, :, None]                           # (Nb, C, 1)
    else:
        # Tiny C: broadcast-multiply + reduce is cheaper than padding for MXU.
        h = jnp.sum(w1t_ref[...][None, :, :] * pooled, axis=1, keepdims=True)
        h = jnp.maximum(h, 0.0)                                 # (Nb, 1, Csq)
        s = jnp.sum(w2_ref[...][None, :, :] * h, axis=2, keepdims=True)
        se = _sigmoid(s)                                        # (Nb, C, 1)

    y = xv * se.astype(xv.dtype)                                # (Nb, C, HWp)

    # ---- Spatial attention: channel mean + 7x7 conv (pad 3) + sigmoid -------
    cm = jnp.mean(y, axis=1, dtype=jnp.float32)                 # (Nb, HWp) dense

    # 49 static taps: roll (XLU) + pre-masked weight multiply-add (VPU).
    # Seven per-row partial accumulators break the serial add dependency chain.
    partials = [jnp.zeros_like(cm) for _ in range(7)]
    for di in range(7):
        for dj in range(7):
            shift = (di - 3) * wdim + (dj - 3)
            w_t = wmask_ref[pl.ds(di * 7 + dj, 1), :]           # (1, HWp)
            if shift == 0:
                tap = cm
            else:
                tap = pltpu.roll(cm, shift=(-shift) % hwp, axis=1)
            partials[di] = partials[di] + w_t * tap
    acc = (((partials[0] + partials[1]) + (partials[2] + partials[3]))
           + ((partials[4] + partials[5]) + partials[6]))
    attn = _sigmoid(acc)                                        # (Nb, HWp)

    o_ref[...] = (y * attn[:, None, :].astype(y.dtype)).astype(o_ref.dtype)


def _tpu_vmem_and_cores():
    """Best-effort query of per-core VMEM capacity and TensorCores per chip."""
    vmem_cap = 64 << 20           # conservative default (v7x per-TC VMEM)
    num_cores = 1
    try:
        info = pltpu.get_tpu_info()
        vmem_cap = int(getattr(info, "vmem_capacity_bytes", vmem_cap))
        for name in ("num_cores", "tensorcores_per_chip", "num_tensorcores",
                     "core_count"):
            v = getattr(info, name, None)
            if isinstance(v, int) and v > 0:
                num_cores = v
                break
    except Exception:
        pass
    return vmem_cap, num_cores


def _choose_batch_block(n, c, hwp, itemsize, vmem_budget, num_cores,
                        step_cap=4 << 20):
    """Pick batch elements per grid step (any divisor of n, not just powers of 2)."""
    io_elem = c * hwp * itemsize                 # HBM block bytes per batch element
    fixed = 49 * hwp * 4 + (2 << 20)             # masked-weight table + slack

    def fits(d):
        io = d * io_elem
        work = 12 * d * hwp * 4                  # cm / 7 partials / attn (f32)
        return io <= step_cap and 6 * io + work + fixed <= vmem_budget

    divisors = [d for d in range(1, n + 1) if n % d == 0]
    feasible = [d for d in divisors if fits(d)] or [1]
    # Prefer the largest feasible block whose grid count is a multiple of the
    # TensorCore count (balanced megacore on v7x); on 1-core chips this allows
    # a single grid step (minimal per-step overhead).
    for d in sorted(feasible, reverse=True):
        if (n // d) % num_cores == 0:
            return d
    return max(feasible)


def se_module_pallas(x, w1, w2, wc, *, batch_block=None):
    """SEModule forward.

    x:  (N, C, H, W) feature map.
    w1: (Csq, C)   weight of Conv2d(C, Csq, 1, bias=False).
    w2: (C, Csq)   weight of Conv2d(Csq, C, 1, bias=False).
    wc: (1, 1, 7, 7) weight of Conv2d(1, 1, 7, padding=3, bias=False).
    """
    N, C, H, W = x.shape
    HW = H * W
    HWp = ((HW + 127) // 128) * 128              # lane-dense padded spatial axis
    Csq = w1.shape[0]
    use_mxu = (C >= 128) and (Csq >= 8)          # MXU gate MLP at production widths

    vmem_cap, num_cores = _tpu_vmem_and_cores()
    vmem_budget = int(min(48 << 20, (3 * vmem_cap) // 4))   # <= 48 MiB, fits v7x

    if batch_block is None:
        batch_block = _choose_batch_block(N, C, HWp, x.dtype.itemsize,
                                          vmem_budget, num_cores)
    if N % batch_block != 0:
        raise ValueError("batch_block must divide the batch size")
    grid = (N // batch_block,)

    # Lane-dense layout; zero-pad the flat spatial axis to a multiple of 128.
    x3 = x.reshape(N, C, HW)
    if HWp != HW:
        x3 = jnp.pad(x3, ((0, 0), (0, 0), (0, HWp - HW)))

    w1t = jnp.asarray(w1, jnp.float32).T                     # (C, Csq)
    w2k = jnp.asarray(w2, jnp.float32)                       # (C, Csq)
    if use_mxu:
        w2k = w2k.T                                          # (Csq, C) for jnp.dot

    # Host-precomputed masked 7x7 weight table: wmask[t, p] = wc[t] if the tap
    # is in-bounds at flat pixel p (and p is a real pixel), else 0.
    flat = np.arange(HW, dtype=np.int64)
    rr, cc = flat // W, flat % W
    valid = np.zeros((49, HWp), np.float32)
    for di in range(7):
        for dj in range(7):
            ok = ((rr + di - 3 >= 0) & (rr + di - 3 < H) &
                  (cc + dj - 3 >= 0) & (cc + dj - 3 < W))
            valid[di * 7 + dj, :HW] = ok.astype(np.float32)
    wmask = jnp.asarray(valid) * jnp.reshape(jnp.asarray(wc, jnp.float32), (49, 1))

    cost = pl.CostEstimate(
        flops=int(N * C * HWp * 4 + N * HWp * 49 * 2 + N * C * Csq * 4),
        transcendentals=int(N * C + N * HWp),
        bytes_accessed=int(2 * N * C * HWp * x.dtype.itemsize),
    )

    kernel = functools.partial(_se_kernel, wdim=W, inv_hw=1.0 / float(HW),
                               use_mxu=use_mxu)
    out3 = pl.pallas_call(
        kernel,
        out_shape=jax.ShapeDtypeStruct((N, C, HWp), x.dtype),
        grid_spec=pltpu.PrefetchScalarGridSpec(
            num_scalar_prefetch=0,
            grid=grid,
            in_specs=[
                pl.BlockSpec((batch_block, C, HWp), lambda b: (b, 0, 0)),
                pl.BlockSpec(w1t.shape, lambda b: (0, 0)),
                pl.BlockSpec(w2k.shape, lambda b: (0, 0)),
                pl.BlockSpec((49, HWp), lambda b: (0, 0)),
            ],
            out_specs=pl.BlockSpec((batch_block, C, HWp), lambda b: (b, 0, 0)),
        ),
        compiler_params=pltpu.CompilerParams(
            dimension_semantics=("parallel",),
            vmem_limit_bytes=vmem_budget,
        ),
        cost_estimate=cost,
    )(x3, w1t, w2k, wmask)

    if HWp != HW:
        out3 = out3[:, :, :HW]
    return out3.reshape(N, C, H, W)


def se_module_ref(x, w1, w2, wc):
    """Pure-JAX reference matching the PyTorch forward."""
    pooled = x.mean(axis=(2, 3))                             # (N, C)
    h = jnp.maximum(pooled @ w1.T, 0.0)                      # (N, Csq)
    se = jax.nn.sigmoid(h @ w2.T)                            # (N, C)
    y = x * se[:, :, None, None]
    cm = y.mean(axis=1, keepdims=True)                       # (N, 1, H, W)
    conv = jax.lax.conv_general_dilated(
        cm, wc, window_strides=(1, 1), padding=((3, 3), (3, 3)),
        dimension_numbers=("NCHW", "OIHW", "NCHW"))
    attn = jax.nn.sigmoid(conv)
    return y * attn


if __name__ == "__main__":
    # SEModule(dim=4, sqrate=2) -> squeeze channels = 2
    N, C, H, W = 2, 4, 16, 16
    Csq = 2

    key = jax.random.PRNGKey(0)
    kx, k1, k2, k3 = jax.random.split(key, 4)
    x = jax.random.normal(kx, (N, C, H, W), dtype=jnp.float32)
    w1 = jax.random.normal(k1, (Csq, C), dtype=jnp.float32) / np.sqrt(C)
    w2 = jax.random.normal(k2, (C, Csq), dtype=jnp.float32) / np.sqrt(Csq)
    wc = jax.random.normal(k3, (1, 1, 7, 7), dtype=jnp.float32) * 0.2

    out = jax.block_until_ready(se_module_pallas(x, w1, w2, wc))
    ref = jax.block_until_ready(se_module_ref(x, w1, w2, wc))
    # Tolerance covers the approx-EUP reciprocal used inside both sigmoids.
    np.testing.assert_allclose(np.asarray(out), np.asarray(ref),
                               rtol=2e-3, atol=2e-3)
    print("KERNEL_OK")
</pallas_src>

<mosaic_0001>
module attributes {stable_mosaic.version = 11 : i64} {
  func.func @_se_kernel(%arg0: i32, %arg1: memref<2x4x256xf32, #tpu.memory_space<vmem>>, %arg2: memref<4x2xf32, #tpu.memory_space<vmem>>, %arg3: memref<4x2xf32, #tpu.memory_space<vmem>>, %arg4: memref<49x256xf32, #tpu.memory_space<vmem>>, %arg5: memref<2x4x256xf32, #tpu.memory_space<vmem>>) attributes {dimension_semantics = [#tpu.dimension_semantics<parallel>], iteration_bounds = array<i64: 1>, scalar_prefetch = 0 : i64, scratch_operands = 0 : i64, tpu.core_type = #tpu.core_type<tc>, window_params = [{transform_indices = @transform_0, window_bounds = array<i64: 2, 4, 256>}, {pipeline_mode = #tpu.pipeline_mode<synchronous>, transform_indices = @transform_1, window_bounds = array<i64: 4, 2>}, {pipeline_mode = #tpu.pipeline_mode<synchronous>, transform_indices = @transform_2, window_bounds = array<i64: 4, 2>}, {pipeline_mode = #tpu.pipeline_mode<synchronous>, transform_indices = @transform_3, window_bounds = array<i64: 49, 256>}, {transform_indices = @transform_4, window_bounds = array<i64: 2, 4, 256>}]} {
    %c0 = arith.constant 0 : index
    %c0_0 = arith.constant 0 : index
    %c0_1 = arith.constant 0 : index
    %0 = vector.load %arg1[%c0, %c0_0, %c0_1] : memref<2x4x256xf32, #tpu.memory_space<vmem>>, vector<2x4x256xf32>
    %cst = arith.constant dense<0.000000e+00> : vector<2x4xf32>
    %1 = vector.multi_reduction <add>, %0, %cst [2] : vector<2x4x256xf32> to vector<2x4xf32>
    %2 = vector.shape_cast %1 : vector<2x4xf32> to vector<2x4x1xf32>
    %cst_2 = arith.constant 3.906250e-03 : f32
    %3 = vector.broadcast %cst_2 : f32 to vector<2x4x1xf32>
    %4 = arith.mulf %2, %3 : vector<2x4x1xf32>
    %c0_3 = arith.constant 0 : index
    %c0_4 = arith.constant 0 : index
    %5 = vector.load %arg2[%c0_3, %c0_4] : memref<4x2xf32, #tpu.memory_space<vmem>>, vector<4x2xf32>
    %6 = vector.shape_cast %5 : vector<4x2xf32> to vector<1x4x2xf32>
    %7 = vector.broadcast %6 : vector<1x4x2xf32> to vector<2x4x2xf32>
    %8 = vector.broadcast %4 : vector<2x4x1xf32> to vector<2x4x2xf32>
    %9 = arith.mulf %7, %8 : vector<2x4x2xf32>
    %cst_5 = arith.constant dense<0.000000e+00> : vector<2x2xf32>
    %10 = vector.multi_reduction <add>, %9, %cst_5 [1] : vector<2x4x2xf32> to vector<2x2xf32>
    %11 = vector.shape_cast %10 : vector<2x2xf32> to vector<2x1x2xf32>
    %cst_6 = arith.constant 0.000000e+00 : f32
    %12 = vector.broadcast %cst_6 : f32 to vector<2x1x2xf32>
    %13 = arith.maximumf %11, %12 : vector<2x1x2xf32>
    %c0_7 = arith.constant 0 : index
    %c0_8 = arith.constant 0 : index
    %14 = vector.load %arg3[%c0_7, %c0_8] : memref<4x2xf32, #tpu.memory_space<vmem>>, vector<4x2xf32>
    %15 = vector.shape_cast %14 : vector<4x2xf32> to vector<1x4x2xf32>
    %16 = vector.broadcast %15 : vector<1x4x2xf32> to vector<2x4x2xf32>
    %17 = vector.broadcast %13 : vector<2x1x2xf32> to vector<2x4x2xf32>
    %18 = arith.mulf %16, %17 : vector<2x4x2xf32>
    %cst_9 = arith.constant dense<0.000000e+00> : vector<2x4xf32>
    %19 = vector.multi_reduction <add>, %18, %cst_9 [2] : vector<2x4x2xf32> to vector<2x4xf32>
    %20 = vector.shape_cast %19 : vector<2x4xf32> to vector<2x4x1xf32>
    %cst_10 = arith.constant -3.000000e+01 : f32
    %21 = vector.broadcast %cst_10 : f32 to vector<2x4x1xf32>
    %22 = arith.maximumf %20, %21 : vector<2x4x1xf32>
    %cst_11 = arith.constant 0.000000e+00 : f32
    %23 = vector.broadcast %cst_11 : f32 to vector<2x4x1xf32>
    %24 = arith.subf %23, %22 : vector<2x4x1xf32>
    %25 = math.exp %24 : vector<2x4x1xf32>
    %cst_12 = arith.constant 1.000000e+00 : f32
    %26 = vector.broadcast %cst_12 : f32 to vector<2x4x1xf32>
    %27 = arith.addf %26, %25 : vector<2x4x1xf32>
    %28 = tpu.reciprocal %27 {approx = true} : vector<2x4x1xf32> -> vector<2x4x1xf32>
    %29 = vector.broadcast %28 : vector<2x4x1xf32> to vector<2x4x256xf32>
    %30 = arith.mulf %0, %29 : vector<2x4x256xf32>
    %cst_13 = arith.constant dense<0.000000e+00> : vector<2x256xf32>
    %31 = vector.multi_reduction <add>, %30, %cst_13 [1] : vector<2x4x256xf32> to vector<2x256xf32>
    %cst_14 = arith.constant 4.000000e+00 : f32
    %32 = vector.broadcast %cst_14 : f32 to vector<2x256xf32>
    %33 = arith.divf %31, %32 : vector<2x256xf32>
    %cst_15 = arith.constant 0.000000e+00 : f32
    %34 = vector.broadcast %cst_15 : f32 to vector<2x256xf32>
    %cst_16 = arith.constant 0.000000e+00 : f32
    %35 = vector.broadcast %cst_16 : f32 to vector<2x256xf32>
    %cst_17 = arith.constant 0.000000e+00 : f32
    %36 = vector.broadcast %cst_17 : f32 to vector<2x256xf32>
    %cst_18 = arith.constant 0.000000e+00 : f32
    %37 = vector.broadcast %cst_18 : f32 to vector<2x256xf32>
    %cst_19 = arith.constant 0.000000e+00 : f32
    %38 = vector.broadcast %cst_19 : f32 to vector<2x256xf32>
    %cst_20 = arith.constant 0.000000e+00 : f32
    %39 = vector.broadcast %cst_20 : f32 to vector<2x256xf32>
    %cst_21 = arith.constant 0.000000e+00 : f32
    %40 = vector.broadcast %cst_21 : f32 to vector<2x256xf32>
    %c0_22 = arith.constant 0 : index
    %c0_23 = arith.constant 0 : index
    %41 = vector.load %arg4[%c0_22, %c0_23] : memref<49x256xf32, #tpu.memory_space<vmem>>, vector<1x256xf32>
    %c51_i32 = arith.constant 51 : i32
    %42 = tpu.dynamic_rotate %33 by %c51_i32 dim 1 : vector<2x256xf32>, i32 -> vector<2x256xf32>
    %43 = vector.broadcast %41 : vector<1x256xf32> to vector<2x256xf32>
    %44 = arith.mulf %43, %42 : vector<2x256xf32>
    %45 = arith.addf %34, %44 : vector<2x256xf32>
    %c1 = arith.constant 1 : index
    %c0_24 = arith.constant 0 : index
    %46 = vector.load %arg4[%c1, %c0_24] : memref<49x256xf32, #tpu.memory_space<vmem>>, vector<1x256xf32>
    %c50_i32 = arith.constant 50 : i32
    %47 = tpu.dynamic_rotate %33 by %c50_i32 dim 1 : vector<2x256xf32>, i32 -> vector<2x256xf32>
    %48 = vector.broadcast %46 : vector<1x256xf32> to vector<2x256xf32>
    %49 = arith.mulf %48, %47 : vector<2x256xf32>
    %50 = arith.addf %45, %49 : vector<2x256xf32>
    %c2 = arith.constant 2 : index
    %c0_25 = arith.constant 0 : index
    %51 = vector.load %arg4[%c2, %c0_25] : memref<49x256xf32, #tpu.memory_space<vmem>>, vector<1x256xf32>
    %c49_i32 = arith.constant 49 : i32
    %52 = tpu.dynamic_rotate %33 by %c49_i32 dim 1 : vector<2x256xf32>, i32 -> vector<2x256xf32>
    %53 = vector.broadcast %51 : vector<1x256xf32> to vector<2x256xf32>
    %54 = arith.mulf %53, %52 : vector<2x256xf32>
    %55 = arith.addf %50, %54 : vector<2x256xf32>
    %c3 = arith.constant 3 : index
    %c0_26 = arith.constant 0 : index
    %56 = vector.load %arg4[%c3, %c0_26] : memref<49x256xf32, #tpu.memory_space<vmem>>, vector<1x256xf32>
    %c48_i32 = arith.constant 48 : i32
    %57 = tpu.dynamic_rotate %33 by %c48_i32 dim 1 : vector<2x256xf32>, i32 -> vector<2x256xf32>
    %58 = vector.broadcast %56 : vector<1x256xf32> to vector<2x256xf32>
    %59 = arith.mulf %58, %57 : vector<2x256xf32>
    %60 = arith.addf %55, %59 : vector<2x256xf32>
    %c4 = arith.constant 4 : index
    %c0_27 = arith.constant 0 : index
    %61 = vector.load %arg4[%c4, %c0_27] : memref<49x256xf32, #tpu.memory_space<vmem>>, vector<1x256xf32>
    %c47_i32 = arith.constant 47 : i32
    %62 = tpu.dynamic_rotate %33 by %c47_i32 dim 1 : vector<2x256xf32>, i32 -> vector<2x256xf32>
    %63 = vector.broadcast %61 : vector<1x256xf32> to vector<2x256xf32>
    %64 = arith.mulf %63, %62 : vector<2x256xf32>
    %65 = arith.addf %60, %64 : vector<2x256xf32>
    %c5 = arith.constant 5 : index
    %c0_28 = arith.constant 0 : index
    %66 = vector.load %arg4[%c5, %c0_28] : memref<49x256xf32, #tpu.memory_space<vmem>>, vector<1x256xf32>
    %c46_i32 = arith.constant 46 : i32
    %67 = tpu.dynamic_rotate %33 by %c46_i32 dim 1 : vector<2x256xf32>, i32 -> vector<2x256xf32>
    %68 = vector.broadcast %66 : vector<1x256xf32> to vector<2x256xf32>
    %69 = arith.mulf %68, %67 : vector<2x256xf32>
    %70 = arith.addf %65, %69 : vector<2x256xf32>
    %c6 = arith.constant 6 : index
    %c0_29 = arith.constant 0 : index
    %71 = vector.load %arg4[%c6, %c0_29] : memref<49x256xf32, #tpu.memory_space<vmem>>, vector<1x256xf32>
    %c45_i32 = arith.constant 45 : i32
    %72 = tpu.dynamic_rotate %33 by %c45_i32 dim 1 : vector<2x256xf32>, i32 -> vector<2x256xf32>
    %73 = vector.broadcast %71 : vector<1x256xf32> to vector<2x256xf32>
    %74 = arith.mulf %73, %72 : vector<2x256xf32>
    %75 = arith.addf %70, %74 : vector<2x256xf32>
    %c7 = arith.constant 7 : index
    %c0_30 = arith.constant 0 : index
    %76 = vector.load %arg4[%c7, %c0_30] : memref<49x256xf32, #tpu.memory_space<vmem>>, vector<1x256xf32>
    %c35_i32 = arith.constant 35 : i32
    %77 = tpu.dynamic_rotate %33 by %c35_i32 dim 1 : vector<2x256xf32>, i32 -> vector<2x256xf32>
    %78 = vector.broadcast %76 : vector<1x256xf32> to vector<2x256xf32>
    %79 = arith.mulf %78, %77 : vector<2x256xf32>
    %80 = arith.addf %35, %79 : vector<2x256xf32>
    %c8 = arith.constant 8 : index
    %c0_31 = arith.constant 0 : index
    %81 = vector.load %arg4[%c8, %c0_31] : memref<49x256xf32, #tpu.memory_space<vmem>>, vector<1x256xf32>
    %c34_i32 = arith.constant 34 : i32
    %82 = tpu.dynamic_rotate %33 by %c34_i32 dim 1 : vector<2x256xf32>, i32 -> vector<2x256xf32>
    %83 = vector.broadcast %81 : vector<1x256xf32> to vector<2x256xf32>
    %84 = arith.mulf %83, %82 : vector<2x256xf32>
    %85 = arith.addf %80, %84 : vector<2x256xf32>
    %c9 = arith.constant 9 : index
    %c0_32 = arith.constant 0 : index
    %86 = vector.load %arg4[%c9, %c0_32] : memref<49x256xf32, #tpu.memory_space<vmem>>, vector<1x256xf32>
    %c33_i32 = arith.constant 33 : i32
    %87 = tpu.dynamic_rotate %33 by %c33_i32 dim 1 : vector<2x256xf32>, i32 -> vector<2x256xf32>
    %88 = vector.broadcast %86 : vector<1x256xf32> to vector<2x256xf32>
    %89 = arith.mulf %88, %87 : vector<2x256xf32>
    %90 = arith.addf %85, %89 : vector<2x256xf32>
    %c10 = arith.constant 10 : index
    %c0_33 = arith.constant 0 : index
    %91 = vector.load %arg4[%c10, %c0_33] : memref<49x256xf32, #tpu.memory_space<vmem>>, vector<1x256xf32>
    %c32_i32 = arith.constant 32 : i32
    %92 = tpu.dynamic_rotate %33 by %c32_i32 dim 1 : vector<2x256xf32>, i32 -> vector<2x256xf32>
    %93 = vector.broadcast %91 : vector<1x256xf32> to vector<2x256xf32>
    %94 = arith.mulf %93, %92 : vector<2x256xf32>
    %95 = arith.addf %90, %94 : vector<2x256xf32>
    %c11 = arith.constant 11 : index
    %c0_34 = arith.constant 0 : index
    %96 = vector.load %arg4[%c11, %c0_34] : memref<49x256xf32, #tpu.memory_space<vmem>>, vector<1x256xf32>
    %c31_i32 = arith.constant 31 : i32
    %97 = tpu.dynamic_rotate %33 by %c31_i32 dim 1 : vector<2x256xf32>, i32 -> vector<2x256xf32>
    %98 = vector.broadcast %96 : vector<1x256xf32> to vector<2x256xf32>
    %99 = arith.mulf %98, %97 : vector<2x256xf32>
    %100 = arith.addf %95, %99 : vector<2x256xf32>
    %c12 = arith.constant 12 : index
    %c0_35 = arith.constant 0 : index
    %101 = vector.load %arg4[%c12, %c0_35] : memref<49x256xf32, #tpu.memory_space<vmem>>, vector<1x256xf32>
    %c30_i32 = arith.constant 30 : i32
    %102 = tpu.dynamic_rotate %33 by %c30_i32 dim 1 : vector<2x256xf32>, i32 -> vector<2x256xf32>
    %103 = vector.broadcast %101 : vector<1x256xf32> to vector<2x256xf32>
    %104 = arith.mulf %103, %102 : vector<2x256xf32>
    %105 = arith.addf %100, %104 : vector<2x256xf32>
    %c13 = arith.constant 13 : index
    %c0_36 = arith.constant 0 : index
    %106 = vector.load %arg4[%c13, %c0_36] : memref<49x256xf32, #tpu.memory_space<vmem>>, vector<1x256xf32>
    %c29_i32 = arith.constant 29 : i32
    %107 = tpu.dynamic_rotate %33 by %c29_i32 dim 1 : vector<2x256xf32>, i32 -> vector<2x256xf32>
    %108 = vector.broadcast %106 : vector<1x256xf32> to vector<2x256xf32>
    %109 = arith.mulf %108, %107 : vector<2x256xf32>
    %110 = arith.addf %105, %109 : vector<2x256xf32>
    %c14 = arith.constant 14 : index
    %c0_37 = arith.constant 0 : index
    %111 = vector.load %arg4[%c14, %c0_37] : memref<49x256xf32, #tpu.memory_space<vmem>>, vector<1x256xf32>
    %c19_i32 = arith.constant 19 : i32
    %112 = tpu.dynamic_rotate %33 by %c19_i32 dim 1 : vector<2x256xf32>, i32 -> vector<2x256xf32>
    %113 = vector.broadcast %111 : vector<1x256xf32> to vector<2x256xf32>
    %114 = arith.mulf %113, %112 : vector<2x256xf32>
    %115 = arith.addf %36, %114 : vector<2x256xf32>
    %c15 = arith.constant 15 : index
    %c0_38 = arith.constant 0 : index
    %116 = vector.load %arg4[%c15, %c0_38] : memref<49x256xf32, #tpu.memory_space<vmem>>, vector<1x256xf32>
    %c18_i32 = arith.constant 18 : i32
    %117 = tpu.dynamic_rotate %33 by %c18_i32 dim 1 : vector<2x256xf32>, i32 -> vector<2x256xf32>
    %118 = vector.broadcast %116 : vector<1x256xf32> to vector<2x256xf32>
    %119 = arith.mulf %118, %117 : vector<2x256xf32>
    %120 = arith.addf %115, %119 : vector<2x256xf32>
    %c16 = arith.constant 16 : index
    %c0_39 = arith.constant 0 : index
    %121 = vector.load %arg4[%c16, %c0_39] : memref<49x256xf32, #tpu.memory_space<vmem>>, vector<1x256xf32>
    %c17_i32 = arith.constant 17 : i32
    %122 = tpu.dynamic_rotate %33 by %c17_i32 dim 1 : vector<2x256xf32>, i32 -> vector<2x256xf32>
    %123 = vector.broadcast %121 : vector<1x256xf32> to vector<2x256xf32>
    %124 = arith.mulf %123, %122 : vector<2x256xf32>
    %125 = arith.addf %120, %124 : vector<2x256xf32>
    %c17 = arith.constant 17 : index
    %c0_40 = arith.constant 0 : index
    %126 = vector.load %arg4[%c17, %c0_40] : memref<49x256xf32, #tpu.memory_space<vmem>>, vector<1x256xf32>
    %c16_i32 = arith.constant 16 : i32
    %127 = tpu.dynamic_rotate %33 by %c16_i32 dim 1 : vector<2x256xf32>, i32 -> vector<2x256xf32>
    %128 = vector.broadcast %126 : vector<1x256xf32> to vector<2x256xf32>
    %129 = arith.mulf %128, %127 : vector<2x256xf32>
    %130 = arith.addf %125, %129 : vector<2x256xf32>
    %c18 = arith.constant 18 : index
    %c0_41 = arith.constant 0 : index
    %131 = vector.load %arg4[%c18, %c0_41] : memref<49x256xf32, #tpu.memory_space<vmem>>, vector<1x256xf32>
    %c15_i32 = arith.constant 15 : i32
    %132 = tpu.dynamic_rotate %33 by %c15_i32 dim 1 : vector<2x256xf32>, i32 -> vector<2x256xf32>
    %133 = vector.broadcast %131 : vector<1x256xf32> to vector<2x256xf32>
    %134 = arith.mulf %133, %132 : vector<2x256xf32>
    %135 = arith.addf %130, %134 : vector<2x256xf32>
    %c19 = arith.constant 19 : index
    %c0_42 = arith.constant 0 : index
    %136 = vector.load %arg4[%c19, %c0_42] : memref<49x256xf32, #tpu.memory_space<vmem>>, vector<1x256xf32>
    %c14_i32 = arith.constant 14 : i32
    %137 = tpu.dynamic_rotate %33 by %c14_i32 dim 1 : vector<2x256xf32>, i32 -> vector<2x256xf32>
    %138 = vector.broadcast %136 : vector<1x256xf32> to vector<2x256xf32>
    %139 = arith.mulf %138, %137 : vector<2x256xf32>
    %140 = arith.addf %135, %139 : vector<2x256xf32>
    %c20 = arith.constant 20 : index
    %c0_43 = arith.constant 0 : index
    %141 = vector.load %arg4[%c20, %c0_43] : memref<49x256xf32, #tpu.memory_space<vmem>>, vector<1x256xf32>
    %c13_i32 = arith.constant 13 : i32
    %142 = tpu.dynamic_rotate %33 by %c13_i32 dim 1 : vector<2x256xf32>, i32 -> vector<2x256xf32>
    %143 = vector.broadcast %141 : vector<1x256xf32> to vector<2x256xf32>
    %144 = arith.mulf %143, %142 : vector<2x256xf32>
    %145 = arith.addf %140, %144 : vector<2x256xf32>
    %c21 = arith.constant 21 : index
    %c0_44 = arith.constant 0 : index
    %146 = vector.load %arg4[%c21, %c0_44] : memref<49x256xf32, #tpu.memory_space<vmem>>, vector<1x256xf32>
    %c3_i32 = arith.constant 3 : i32
    %147 = tpu.dynamic_rotate %33 by %c3_i32 dim 1 : vector<2x256xf32>, i32 -> vector<2x256xf32>
    %148 = vector.broadcast %146 : vector<1x256xf32> to vector<2x256xf32>
    %149 = arith.mulf %148, %147 : vector<2x256xf32>
    %150 = arith.addf %37, %149 : vector<2x256xf32>
    %c22 = arith.constant 22 : index
    %c0_45 = arith.constant 0 : index
    %151 = vector.load %arg4[%c22, %c0_45] : memref<49x256xf32, #tpu.memory_space<vmem>>, vector<1x256xf32>
    %c2_i32 = arith.constant 2 : i32
    %152 = tpu.dynamic_rotate %33 by %c2_i32 dim 1 : vector<2x256xf32>, i32 -> vector<2x256xf32>
    %153 = vector.broadcast %151 : vector<1x256xf32> to vector<2x256xf32>
    %154 = arith.mulf %153, %152 : vector<2x256xf32>
    %155 = arith.addf %150, %154 : vector<2x256xf32>
    %c23 = arith.constant 23 : index
    %c0_46 = arith.constant 0 : index
    %156 = vector.load %arg4[%c23, %c0_46] : memref<49x256xf32, #tpu.memory_space<vmem>>, vector<1x256xf32>
    %c1_i32 = arith.constant 1 : i32
    %157 = tpu.dynamic_rotate %33 by %c1_i32 dim 1 : vector<2x256xf32>, i32 -> vector<2x256xf32>
    %158 = vector.broadcast %156 : vector<1x256xf32> to vector<2x256xf32>
    %159 = arith.mulf %158, %157 : vector<2x256xf32>
    %160 = arith.addf %155, %159 : vector<2x256xf32>
    %c24 = arith.constant 24 : index
    %c0_47 = arith.constant 0 : index
    %161 = vector.load %arg4[%c24, %c0_47] : memref<49x256xf32, #tpu.memory_space<vmem>>, vector<1x256xf32>
    %162 = vector.broadcast %161 : vector<1x256xf32> to vector<2x256xf32>
    %163 = arith.mulf %162, %33 : vector<2x256xf32>
    %164 = arith.addf %160, %163 : vector<2x256xf32>
    %c25 = arith.constant 25 : index
    %c0_48 = arith.constant 0 : index
    %165 = vector.load %arg4[%c25, %c0_48] : memref<49x256xf32, #tpu.memory_space<vmem>>, vector<1x256xf32>
    %c255_i32 = arith.constant 255 : i32
    %166 = tpu.dynamic_rotate %33 by %c255_i32 dim 1 : vector<2x256xf32>, i32 -> vector<2x256xf32>
    %167 = vector.broadcast %165 : vector<1x256xf32> to vector<2x256xf32>
    %168 = arith.mulf %167, %166 : vector<2x256xf32>
    %169 = arith.addf %164, %168 : vector<2x256xf32>
    %c26 = arith.constant 26 : index
    %c0_49 = arith.constant 0 : index
    %170 = vector.load %arg4[%c26, %c0_49] : memref<49x256xf32, #tpu.memory_space<vmem>>, vector<1x256xf32>
    %c254_i32 = arith.constant 254 : i32
    %171 = tpu.dynamic_rotate %33 by %c254_i32 dim 1 : vector<2x256xf32>, i32 -> vector<2x256xf32>
    %172 = vector.broadcast %170 : vector<1x256xf32> to vector<2x256xf32>
    %173 = arith.mulf %172, %171 : vector<2x256xf32>
    %174 = arith.addf %169, %173 : vector<2x256xf32>
    %c27 = arith.constant 27 : index
    %c0_50 = arith.constant 0 : index
    %175 = vector.load %arg4[%c27, %c0_50] : memref<49x256xf32, #tpu.memory_space<vmem>>, vector<1x256xf32>
    %c253_i32 = arith.constant 253 : i32
    %176 = tpu.dynamic_rotate %33 by %c253_i32 dim 1 : vector<2x256xf32>, i32 -> vector<2x256xf32>
    %177 = vector.broadcast %175 : vector<1x256xf32> to vector<2x256xf32>
    %178 = arith.mulf %177, %176 : vector<2x256xf32>
    %179 = arith.addf %174, %178 : vector<2x256xf32>
    %c28 = arith.constant 28 : index
    %c0_51 = arith.constant 0 : index
    %180 = vector.load %arg4[%c28, %c0_51] : memref<49x256xf32, #tpu.memory_space<vmem>>, vector<1x256xf32>
    %c243_i32 = arith.constant 243 : i32
    %181 = tpu.dynamic_rotate %33 by %c243_i32 dim 1 : vector<2x256xf32>, i32 -> vector<2x256xf32>
    %182 = vector.broadcast %180 : vector<1x256xf32> to vector<2x256xf32>
    %183 = arith.mulf %182, %181 : vector<2x256xf32>
    %184 = arith.addf %38, %183 : vector<2x256xf32>
    %c29 = arith.constant 29 : index
    %c0_52 = arith.constant 0 : index
    %185 = vector.load %arg4[%c29, %c0_52] : memref<49x256xf32, #tpu.memory_space<vmem>>, vector<1x256xf32>
    %c242_i32 = arith.constant 242 : i32
    %186 = tpu.dynamic_rotate %33 by %c242_i32 dim 1 : vector<2x256xf32>, i32 -> vector<2x256xf32>
    %187 = vector.broadcast %185 : vector<1x256xf32> to vector<2x256xf32>
    %188 = arith.mulf %187, %186 : vector<2x256xf32>
    %189 = arith.addf %184, %188 : vector<2x256xf32>
    %c30 = arith.constant 30 : index
    %c0_53 = arith.constant 0 : index
    %190 = vector.load %arg4[%c30, %c0_53] : memref<49x256xf32, #tpu.memory_space<vmem>>, vector<1x256xf32>
    %c241_i32 = arith.constant 241 : i32
    %191 = tpu.dynamic_rotate %33 by %c241_i32 dim 1 : vector<2x256xf32>, i32 -> vector<2x256xf32>
    %192 = vector.broadcast %190 : vector<1x256xf32> to vector<2x256xf32>
    %193 = arith.mulf %192, %191 : vector<2x256xf32>
    %194 = arith.addf %189, %193 : vector<2x256xf32>
    %c31 = arith.constant 31 : index
    %c0_54 = arith.constant 0 : index
    %195 = vector.load %arg4[%c31, %c0_54] : memref<49x256xf32, #tpu.memory_space<vmem>>, vector<1x256xf32>
    %c240_i32 = arith.constant 240 : i32
    %196 = tpu.dynamic_rotate %33 by %c240_i32 dim 1 : vector<2x256xf32>, i32 -> vector<2x256xf32>
    %197 = vector.broadcast %195 : vector<1x256xf32> to vector<2x256xf32>
    %198 = arith.mulf %197, %196 : vector<2x256xf32>
    %199 = arith.addf %194, %198 : vector<2x256xf32>
    %c32 = arith.constant 32 : index
    %c0_55 = arith.constant 0 : index
    %200 = vector.load %arg4[%c32, %c0_55] : memref<49x256xf32, #tpu.memory_space<vmem>>, vector<1x256xf32>
    %c239_i32 = arith.constant 239 : i32
    %201 = tpu.dynamic_rotate %33 by %c239_i32 dim 1 : vector<2x256xf32>, i32 -> vector<2x256xf32>
    %202 = vector.broadcast %200 : vector<1x256xf32> to vector<2x256xf32>
    %203 = arith.mulf %202, %201 : vector<2x256xf32>
    %204 = arith.addf %199, %203 : vector<2x256xf32>
    %c33 = arith.constant 33 : index
    %c0_56 = arith.constant 0 : index
    %205 = vector.load %arg4[%c33, %c0_56] : memref<49x256xf32, #tpu.memory_space<vmem>>, vector<1x256xf32>
    %c238_i32 = arith.constant 238 : i32
    %206 = tpu.dynamic_rotate %33 by %c238_i32 dim 1 : vector<2x256xf32>, i32 -> vector<2x256xf32>
    %207 = vector.broadcast %205 : vector<1x256xf32> to vector<2x256xf32>
    %208 = arith.mulf %207, %206 : vector<2x256xf32>
    %209 = arith.addf %204, %208 : vector<2x256xf32>
    %c34 = arith.constant 34 : index
    %c0_57 = arith.constant 0 : index
    %210 = vector.load %arg4[%c34, %c0_57] : memref<49x256xf32, #tpu.memory_space<vmem>>, vector<1x256xf32>
    %c237_i32 = arith.constant 237 : i32
    %211 = tpu.dynamic_rotate %33 by %c237_i32 dim 1 : vector<2x256xf32>, i32 -> vector<2x256xf32>
    %212 = vector.broadcast %210 : vector<1x256xf32> to vector<2x256xf32>
    %213 = arith.mulf %212, %211 : vector<2x256xf32>
    %214 = arith.addf %209, %213 : vector<2x256xf32>
    %c35 = arith.constant 35 : index
    %c0_58 = arith.constant 0 : index
    %215 = vector.load %arg4[%c35, %c0_58] : memref<49x256xf32, #tpu.memory_space<vmem>>, vector<1x256xf32>
    %c227_i32 = arith.constant 227 : i32
    %216 = tpu.dynamic_rotate %33 by %c227_i32 dim 1 : vector<2x256xf32>, i32 -> vector<2x256xf32>
    %217 = vector.broadcast %215 : vector<1x256xf32> to vector<2x256xf32>
    %218 = arith.mulf %217, %216 : vector<2x256xf32>
    %219 = arith.addf %39, %218 : vector<2x256xf32>
    %c36 = arith.constant 36 : index
    %c0_59 = arith.constant 0 : index
    %220 = vector.load %arg4[%c36, %c0_59] : memref<49x256xf32, #tpu.memory_space<vmem>>, vector<1x256xf32>
    %c226_i32 = arith.constant 226 : i32
    %221 = tpu.dynamic_rotate %33 by %c226_i32 dim 1 : vector<2x256xf32>, i32 -> vector<2x256xf32>
    %222 = vector.broadcast %220 : vector<1x256xf32> to vector<2x256xf32>
    %223 = arith.mulf %222, %221 : vector<2x256xf32>
    %224 = arith.addf %219, %223 : vector<2x256xf32>
    %c37 = arith.constant 37 : index
    %c0_60 = arith.constant 0 : index
    %225 = vector.load %arg4[%c37, %c0_60] : memref<49x256xf32, #tpu.memory_space<vmem>>, vector<1x256xf32>
    %c225_i32 = arith.constant 225 : i32
    %226 = tpu.dynamic_rotate %33 by %c225_i32 dim 1 : vector<2x256xf32>, i32 -> vector<2x256xf32>
    %227 = vector.broadcast %225 : vector<1x256xf32> to vector<2x256xf32>
    %228 = arith.mulf %227, %226 : vector<2x256xf32>
    %229 = arith.addf %224, %228 : vector<2x256xf32>
    %c38 = arith.constant 38 : index
    %c0_61 = arith.constant 0 : index
    %230 = vector.load %arg4[%c38, %c0_61] : memref<49x256xf32, #tpu.memory_space<vmem>>, vector<1x256xf32>
    %c224_i32 = arith.constant 224 : i32
    %231 = tpu.dynamic_rotate %33 by %c224_i32 dim 1 : vector<2x256xf32>, i32 -> vector<2x256xf32>
    %232 = vector.broadcast %230 : vector<1x256xf32> to vector<2x256xf32>
    %233 = arith.mulf %232, %231 : vector<2x256xf32>
    %234 = arith.addf %229, %233 : vector<2x256xf32>
    %c39 = arith.constant 39 : index
    %c0_62 = arith.constant 0 : index
    %235 = vector.load %arg4[%c39, %c0_62] : memref<49x256xf32, #tpu.memory_space<vmem>>, vector<1x256xf32>
    %c223_i32 = arith.constant 223 : i32
    %236 = tpu.dynamic_rotate %33 by %c223_i32 dim 1 : vector<2x256xf32>, i32 -> vector<2x256xf32>
    %237 = vector.broadcast %235 : vector<1x256xf32> to vector<2x256xf32>
    %238 = arith.mulf %237, %236 : vector<2x256xf32>
    %239 = arith.addf %234, %238 : vector<2x256xf32>
    %c40 = arith.constant 40 : index
    %c0_63 = arith.constant 0 : index
    %240 = vector.load %arg4[%c40, %c0_63] : memref<49x256xf32, #tpu.memory_space<vmem>>, vector<1x256xf32>
    %c222_i32 = arith.constant 222 : i32
    %241 = tpu.dynamic_rotate %33 by %c222_i32 dim 1 : vector<2x256xf32>, i32 -> vector<2x256xf32>
    %242 = vector.broadcast %240 : vector<1x256xf32> to vector<2x256xf32>
    %243 = arith.mulf %242, %241 : vector<2x256xf32>
    %244 = arith.addf %239, %243 : vector<2x256xf32>
    %c41 = arith.constant 41 : index
    %c0_64 = arith.constant 0 : index
    %245 = vector.load %arg4[%c41, %c0_64] : memref<49x256xf32, #tpu.memory_space<vmem>>, vector<1x256xf32>
    %c221_i32 = arith.constant 221 : i32
    %246 = tpu.dynamic_rotate %33 by %c221_i32 dim 1 : vector<2x256xf32>, i32 -> vector<2x256xf32>
    %247 = vector.broadcast %245 : vector<1x256xf32> to vector<2x256xf32>
    %248 = arith.mulf %247, %246 : vector<2x256xf32>
    %249 = arith.addf %244, %248 : vector<2x256xf32>
    %c42 = arith.constant 42 : index
    %c0_65 = arith.constant 0 : index
    %250 = vector.load %arg4[%c42, %c0_65] : memref<49x256xf32, #tpu.memory_space<vmem>>, vector<1x256xf32>
    %c211_i32 = arith.constant 211 : i32
    %251 = tpu.dynamic_rotate %33 by %c211_i32 dim 1 : vector<2x256xf32>, i32 -> vector<2x256xf32>
    %252 = vector.broadcast %250 : vector<1x256xf32> to vector<2x256xf32>
    %253 = arith.mulf %252, %251 : vector<2x256xf32>
    %254 = arith.addf %40, %253 : vector<2x256xf32>
    %c43 = arith.constant 43 : index
    %c0_66 = arith.constant 0 : index
    %255 = vector.load %arg4[%c43, %c0_66] : memref<49x256xf32, #tpu.memory_space<vmem>>, vector<1x256xf32>
    %c210_i32 = arith.constant 210 : i32
    %256 = tpu.dynamic_rotate %33 by %c210_i32 dim 1 : vector<2x256xf32>, i32 -> vector<2x256xf32>
    %257 = vector.broadcast %255 : vector<1x256xf32> to vector<2x256xf32>
    %258 = arith.mulf %257, %256 : vector<2x256xf32>
    %259 = arith.addf %254, %258 : vector<2x256xf32>
    %c44 = arith.constant 44 : index
    %c0_67 = arith.constant 0 : index
    %260 = vector.load %arg4[%c44, %c0_67] : memref<49x256xf32, #tpu.memory_space<vmem>>, vector<1x256xf32>
    %c209_i32 = arith.constant 209 : i32
    %261 = tpu.dynamic_rotate %33 by %c209_i32 dim 1 : vector<2x256xf32>, i32 -> vector<2x256xf32>
    %262 = vector.broadcast %260 : vector<1x256xf32> to vector<2x256xf32>
    %263 = arith.mulf %262, %261 : vector<2x256xf32>
    %264 = arith.addf %259, %263 : vector<2x256xf32>
    %c45 = arith.constant 45 : index
    %c0_68 = arith.constant 0 : index
    %265 = vector.load %arg4[%c45, %c0_68] : memref<49x256xf32, #tpu.memory_space<vmem>>, vector<1x256xf32>
    %c208_i32 = arith.constant 208 : i32
    %266 = tpu.dynamic_rotate %33 by %c208_i32 dim 1 : vector<2x256xf32>, i32 -> vector<2x256xf32>
    %267 = vector.broadcast %265 : vector<1x256xf32> to vector<2x256xf32>
    %268 = arith.mulf %267, %266 : vector<2x256xf32>
    %269 = arith.addf %264, %268 : vector<2x256xf32>
    %c46 = arith.constant 46 : index
    %c0_69 = arith.constant 0 : index
    %270 = vector.load %arg4[%c46, %c0_69] : memref<49x256xf32, #tpu.memory_space<vmem>>, vector<1x256xf32>
    %c207_i32 = arith.constant 207 : i32
    %271 = tpu.dynamic_rotate %33 by %c207_i32 dim 1 : vector<2x256xf32>, i32 -> vector<2x256xf32>
    %272 = vector.broadcast %270 : vector<1x256xf32> to vector<2x256xf32>
    %273 = arith.mulf %272, %271 : vector<2x256xf32>
    %274 = arith.addf %269, %273 : vector<2x256xf32>
    %c47 = arith.constant 47 : index
    %c0_70 = arith.constant 0 : index
    %275 = vector.load %arg4[%c47, %c0_70] : memref<49x256xf32, #tpu.memory_space<vmem>>, vector<1x256xf32>
    %c206_i32 = arith.constant 206 : i32
    %276 = tpu.dynamic_rotate %33 by %c206_i32 dim 1 : vector<2x256xf32>, i32 -> vector<2x256xf32>
    %277 = vector.broadcast %275 : vector<1x256xf32> to vector<2x256xf32>
    %278 = arith.mulf %277, %276 : vector<2x256xf32>
    %279 = arith.addf %274, %278 : vector<2x256xf32>
    %c48 = arith.constant 48 : index
    %c0_71 = arith.constant 0 : index
    %280 = vector.load %arg4[%c48, %c0_71] : memref<49x256xf32, #tpu.memory_space<vmem>>, vector<1x256xf32>
    %c205_i32 = arith.constant 205 : i32
    %281 = tpu.dynamic_rotate %33 by %c205_i32 dim 1 : vector<2x256xf32>, i32 -> vector<2x256xf32>
    %282 = vector.broadcast %280 : vector<1x256xf32> to vector<2x256xf32>
    %283 = arith.mulf %282, %281 : vector<2x256xf32>
    %284 = arith.addf %279, %283 : vector<2x256xf32>
    %285 = arith.addf %75, %110 : vector<2x256xf32>
    %286 = arith.addf %145, %179 : vector<2x256xf32>
    %287 = arith.addf %285, %286 : vector<2x256xf32>
    %288 = arith.addf %214, %249 : vector<2x256xf32>
    %289 = arith.addf %288, %284 : vector<2x256xf32>
    %290 = arith.addf %287, %289 : vector<2x256xf32>
    %cst_72 = arith.constant -3.000000e+01 : f32
    %291 = vector.broadcast %cst_72 : f32 to vector<2x256xf32>
    %292 = arith.maximumf %290, %291 : vector<2x256xf32>
    %cst_73 = arith.constant 0.000000e+00 : f32
    %293 = vector.broadcast %cst_73 : f32 to vector<2x256xf32>
    %294 = arith.subf %293, %292 : vector<2x256xf32>
    %295 = math.exp %294 : vector<2x256xf32>
    %cst_74 = arith.constant 1.000000e+00 : f32
    %296 = vector.broadcast %cst_74 : f32 to vector<2x256xf32>
    %297 = arith.addf %296, %295 : vector<2x256xf32>
    %298 = tpu.reciprocal %297 {approx = true} : vector<2x256xf32> -> vector<2x256xf32>
    %299 = vector.shape_cast %298 : vector<2x256xf32> to vector<2x1x256xf32>
    %300 = vector.broadcast %299 : vector<2x1x256xf32> to vector<2x4x256xf32>
    %301 = arith.mulf %30, %300 : vector<2x4x256xf32>
    %c0_75 = arith.constant 0 : index
    %c0_76 = arith.constant 0 : index
    %c0_77 = arith.constant 0 : index
    %302 = vector.load %arg5[%c0_75, %c0_76, %c0_77] : memref<2x4x256xf32, #tpu.memory_space<vmem>>, vector<2x4x256xf32>
    tpu.vector_store %arg5[%c0_75, %c0_76, %c0_77], %301 {strides = array<i32>} : memref<2x4x256xf32, #tpu.memory_space<vmem>>, vector<2x4x256xf32>,
    return
  }
  func.func @transform_0(%arg0: i32) -> (i32, i32, i32) {
    %c0_i32 = arith.constant 0 : i32
    %c0_i32_0 = arith.constant 0 : i32
    %c0_i32_1 = arith.constant 0 : i32
    return %arg0, %c0_i32, %c0_i32_0 : i32, i32, i32
  }
  func.func @transform_1(%arg0: i32) -> (i32, i32) {
    %c0_i32 = arith.constant 0 : i32
    %c0_i32_0 = arith.constant 0 : i32
    %c0_i32_1 = arith.constant 0 : i32
    return %c0_i32, %c0_i32_0 : i32, i32
  }
  func.func @transform_2(%arg0: i32) -> (i32, i32) {
    %c0_i32 = arith.constant 0 : i32
    %c0_i32_0 = arith.constant 0 : i32
    %c0_i32_1 = arith.constant 0 : i32
    return %c0_i32, %c0_i32_0 : i32, i32
  }
  func.func @transform_3(%arg0: i32) -> (i32, i32) {
    %c0_i32 = arith.constant 0 : i32
    %c0_i32_0 = arith.constant 0 : i32
    %c0_i32_1 = arith.constant 0 : i32
    return %c0_i32, %c0_i32_0 : i32, i32
  }
  func.func @transform_4(%arg0: i32) -> (i32, i32, i32) {
    %c0_i32 = arith.constant 0 : i32
    %c0_i32_0 = arith.constant 0 : i32
    %c0_i32_1 = arith.constant 0 : i32
    return %arg0, %c0_i32, %c0_i32_0 : i32, i32, i32
  }
}

</mosaic_0001>

<llo_original>
// kernel: tpu_custom_call.1
$region0: #{tpu_custom_call.1}
  #allocation0 [shape = 'u32[]', space=smem, size = 0x4, offset = 0x4, fixed_abs, tag = 'smem constant byte address 0x4 - core index']
  #allocation1 [shape = 'u32[72,128]{1,0:T(1,128)}', space=vmem, size = 0x9000, scoped, tag = 'internal scratch']
  %s0 = inlined_call_operand.hbm [shape: f32[2,4,256], index: 0, kind: input, shape index: {}]
  %s1 = inlined_call_operand.vmem [shape: f32[4,2], index: 1, kind: input, shape index: {}]
  %s2 = inlined_call_operand.vmem [shape: f32[4,2], index: 2, kind: input, shape index: {}]
  %s3 = inlined_call_operand.hbm [shape: f32[49,256], index: 3, kind: input, shape index: {}]
  %s4 = inlined_call_operand.hbm [shape: f32[2,4,256], index: 4, kind: output, shape index: {}]
  %s5 = sld [smem:[#allocation0]]
  $region34: #{tpu_custom_call.1} parent=0
    _
  %s7 = ssub.s32 1, %s5
  %s8 = scalar_select 0, %s7, %s5
  $region1: #{tpu_custom_call.1} parent=0
    #allocation2 [shape = 'u8[8192]{0}', space=vmem, size = 0x2000, scoped, tag = 'input window, operand 0, single buffered']
    #allocation3 [shape = 's32[1]{0}', space=sflag, size = 0x4, scoped, tag = 'scoped memory for tpu_custom_call.1']
    #allocation4 [shape = 's32[1]{0}', space=sflag, size = 0x4, scoped, tag = 'scoped memory for tpu_custom_call.1']
    #allocation5 [shape = 'u8[57344]{0}', space=vmem, size = 0xe000, scoped, tag = 'input window, operand 3, single buffered']
    #allocation6 [shape = 's32[1]{0}', space=sflag, size = 0x4, scoped, tag = 'scoped memory for tpu_custom_call.1']
    #allocation7 [shape = 'u8[8192]{0}', space=vmem, size = 0x2000, scoped, tag = 'output window, operand 0, single buffered']
    %9 = vsyncpa [#allocation3], 0
    %10 = vsyncpa [#allocation6], 0
    %11 = vsyncpa [#allocation4], 0
    // Predicated region
    $region2: #{tpu_custom_call.1} parent=1 // pred_check
      _
    $region3: #{tpu_custom_call.1} parent=1 // pred_check_branch
      %13 = sbr.rel (0) target = $region5
    $region4: #{tpu_custom_call.1} parent=1 // pred_region
      %15 = vsyncadd [#allocation3], 0
      %s16 = sshll.u32 %s0, 4
      %s17 = int_to_ptr.hbm [resolvable:$true] %s16
      %s18 = sshll.u32 [#allocation2], 4
      %s19 = int_to_ptr.vmem [resolvable:$true] %s18
      %24 = dma.hbm_to_vmem [thread:$0]  %s17, 256, %s19, [#allocation3], 128, 128, 8
    $region5: #{tpu_custom_call.1} parent=1 // pred_fallthru
      _
    // Predicated region
    $region6: #{tpu_custom_call.1} parent=1 // pred_check
      _
    $region7: #{tpu_custom_call.1} parent=1 // pred_check_branch
      %26 = sbr.rel (0) target = $region9
    $region8: #{tpu_custom_call.1} parent=1 // pred_region
      _
    $region9: #{tpu_custom_call.1} parent=1 // pred_fallthru
      _
    // Predicated region
    $region10: #{tpu_custom_call.1} parent=1 // pred_check
      _
    $region11: #{tpu_custom_call.1} parent=1 // pred_check_branch
      %28 = sbr.rel (0) target = $region13
    $region12: #{tpu_custom_call.1} parent=1 // pred_region
      _
    $region13: #{tpu_custom_call.1} parent=1 // pred_fallthru
      _
    // Predicated region
    $region14: #{tpu_custom_call.1} parent=1 // pred_check
      _
    $region15: #{tpu_custom_call.1} parent=1 // pred_check_branch
      %30 = sbr.rel (0) target = $region17
    $region16: #{tpu_custom_call.1} parent=1 // pred_region
      %32 = vsyncadd [#allocation6], 0
      %s33 = sshll.u32 %s3, 4
      %s34 = int_to_ptr.hbm [resolvable:$true] %s33
      %s35 = sshll.u32 [#allocation5], 4
      %s36 = int_to_ptr.vmem [resolvable:$true] %s35
      %41 = dma.hbm_to_vmem [thread:$0]  %s34, 1792, %s36, [#allocation6], 256, 256, 16
    $region17: #{tpu_custom_call.1} parent=1 // pred_fallthru
      _
    // Predicated region
    $region18: #{tpu_custom_call.1} parent=1 // pred_check
      _
    $region19: #{tpu_custom_call.1} parent=1 // pred_check_branch
      %43 = sbr.rel (0) target = $region21
    $region20: #{tpu_custom_call.1} parent=1 // pred_region
      %45 = dma.done [#allocation3], 256
    $region21: #{tpu_custom_call.1} parent=1 // pred_fallthru
      _
    // Predicated region
    $region22: #{tpu_custom_call.1} parent=1 // pred_check
      _
    $region23: #{tpu_custom_call.1} parent=1 // pred_check_branch
      %47 = sbr.rel (0) target = $region25
    $region24: #{tpu_custom_call.1} parent=1 // pred_region
      %49 = dma.done [#allocation6], 1792
    $region25: #{tpu_custom_call.1} parent=1 // pred_fallthru
      _
    %v50 = vld [vmem:[#allocation2] sm:$0xff]
    %v51 = vld [vmem:[#allocation2 + $0x8] sm:$0xff]
    %54 = vst [vmem:[#allocation1] ss:$2 sm:$0xff] %v50
    %v55 = vld.sshfl [vmem:[#allocation1] sm:$0xff pattern:$0x75316420]
    %v56 = vld.sshfl [vmem:[#allocation1 + $0x8] sm:$0xff pattern:$0x75316420]
    %s57 = scalar_lea.vmem [#allocation1], 16
    %58 = vst [vmem:[%s57] ss:$2 sm:$0xff] %v51
    %v59 = vld.sshfl [vmem:[#allocation1 + $0x10] sm:$0xff pattern:$0x75316420]
    %v60 = vld.sshfl [vmem:[#allocation1 + $0x18] sm:$0xff pattern:$0x75316420]
    %vm65 = vcmask 1043456
    %v66 = vsel %vm65, %v55, 0.0
    %v67 = vsel %vm65, %v56, 0.0
    %v68 = vadd.f32 %v66, %v67
    %69 = vadd.xlane.f32.xlu0 %v68
    %v70 = vpop.xlane.xlu0 %69
    %v71 = vsel %vm65, %v59, 0.0
    %v72 = vsel %vm65, %v60, 0.0
    %v73 = vadd.f32 %v71, %v72
    %74 = vadd.xlane.f32.xlu0 %v73
    %v75 = vpop.xlane.xlu0 %74
    %v76 = vmul.f32 %v70, 0.00390625
    %v77 = vmul.f32 %v75, 0.00390625
    %v78 = vld [vmem:[%s1] sm:$0xf]
    %v79 = vmul.f32 %v78, %v76
    %v80 = vmul.f32 %v78, %v77
    %vm81 = vcmask 11264
    %v82 = vsel %vm81, %v79, 0.0
    %v83 = vrot.slane %v82, 4
    %v84 = vadd.f32 %v82, %v83
    %v85 = vrot.slane %v84, 2
    %v86 = vadd.f32 %v84, %v85
    %v87 = vrot.slane %v86, 1
    %v88 = vadd.f32 %v86, %v87
    %v89 = vsel %vm81, %v80, 0.0
    %v90 = vrot.slane %v89, 4
    %v91 = vadd.f32 %v89, %v90
    %v92 = vrot.slane %v91, 2
    %v93 = vadd.f32 %v91, %v92
    %v94 = vrot.slane %v93, 1
    %v95 = vadd.f32 %v93, %v94
    %v96 = vmax.f32 %v88, 0.0
    %v97 = vmax.f32 %v95, 0.0
    %v98 = vld [vmem:[%s2] sm:$0xf]
    %v99 = vmul.f32 %v98, %v96
    %v100 = vmul.f32 %v98, %v97
    %v101 = vsel %vm81, %v99, 0.0
    %102 = vadd.xlane.f32.xlu0 %v101
    %v103 = vpop.xlane.xlu0 %102
    %v104 = vsel %vm81, %v100, 0.0
    %105 = vadd.xlane.f32.xlu0 %v104
    %v106 = vpop.xlane.xlu0 %105
    %v107 = vmax.f32 %v103, -30.0
    %v108 = vmax.f32 %v106, -30.0
    %v109 = vsub.f32 0.0, %v107
    %v110 = vsub.f32 0.0, %v108
    %v111 = vmul.f32 %v109, 1.442695
    %v112 = vpow.pop %v111
    %v113 = vmul.f32 %v110, 1.442695
    %v114 = vpow.pop %v113
    %v115 = vadd.f32 %v112, 1.0
    %v116 = vadd.f32 %v114, 1.0
    %v117 = vrcp.pop %v115
    %v118 = vrcp.pop %v116
    %v122 = vunpack.c.l.s4 839922192
    %v123 = vunpack.c.0.s8 %v122
    %v124 = vperm.slane %v117, %v123
    %v126 = vunpack.c.l.s4 839922192
    %v127 = vunpack.c.0.s8 %v126
    %v128 = vperm.slane %v118, %v127
    %v131 = vmul.f32 %v50, %v124
    %v132 = vmul.f32 %v51, %v128
    %135 = vst [vmem:[#allocation1] ss:$2 sm:$0xff] %v131
    %v136 = vld.sshfl [vmem:[#allocation1] sm:$0xff pattern:$0x75316420]
    %v137 = vld.sshfl [vmem:[#allocation1 + $0x8] sm:$0xff pattern:$0x75316420]
    %s138 = scalar_lea.vmem [#allocation1], 16
    %139 = vst [vmem:[%s138] ss:$2 sm:$0xff] %v132
    %v140 = vld.sshfl [vmem:[#allocation1 + $0x10] sm:$0xff pattern:$0x75316420]
    %v141 = vld.sshfl [vmem:[#allocation1 + $0x18] sm:$0xff pattern:$0x75316420]
    %v146 = vsel %vm65, %v136, 0.0
    %v147 = vrot.slane %v146, 4
    %v148 = vadd.f32 %v146, %v147
    %v149 = vrot.slane %v148, 2
    %v150 = vadd.f32 %v148, %v149
    %v151 = vrot.slane %v150, 1
    %v152 = vadd.f32 %v150, %v151
    %v153 = vsel %vm65, %v137, 0.0
    %v154 = vrot.slane %v153, 4
    %v155 = vadd.f32 %v153, %v154
    %v156 = vrot.slane %v155, 2
    %v157 = vadd.f32 %v155, %v156
    %v158 = vrot.slane %v157, 1
    %v159 = vadd.f32 %v157, %v158
    %v160 = vsel %vm65, %v140, 0.0
    %v161 = vrot.slane %v160, 4
    %v162 = vadd.f32 %v160, %v161
    %v163 = vrot.slane %v162, 2
    %v164 = vadd.f32 %v162, %v163
    %v165 = vrot.slane %v164, 1
    %v166 = vadd.f32 %v164, %v165
    %v167 = vsel %vm65, %v141, 0.0
    %v168 = vrot.slane %v167, 4
    %v169 = vadd.f32 %v167, %v168
    %v170 = vrot.slane %v169, 2
    %v171 = vadd.f32 %v169, %v170
    %v172 = vrot.slane %v171, 1
    %v173 = vadd.f32 %v171, %v172
    %v174 = vrcp.pop 4.0
    %v175 = vmul.f32 4.0, %v174
    %v176 = vsub.f32 1.0, %v175
    %v177 = vmul.f32 %v174, %v176
    %v178 = vadd.f32 %v174, %v177
    %vm179 = vweird.f32 %v174
    %v180 = vsel %vm179, %v174, %v178
    %v181 = vmul.f32 %v152, %v180
    %v182 = vmul.f32 %v159, %v180
    %v183 = vmul.f32 %v166, %v180
    %v184 = vmul.f32 %v173, %v180
    %v185 = vld [vmem:[#allocation5] ss:$8 sm:$0x3]
    %vm190 = vcmask 1041409
    %v191 = vsel %vm190, %v183, %v181
    %v192 = vsel %vm190, %v184, %v182
    %195 = vrot.lane.b32.xlu0 %v191, 51
    %v196 = vpop.permute.xlu0 %195
    %197 = vrot.lane.b32.xlu0 %v192, 51
    %v198 = vpop.permute.xlu0 %197
    %v199 = vlaneseq
    %v200 = vand.u32 %v199, 127
    %vm201 = vcmp.lt.s32.totalorder %v200, 51
    %v202 = vsel %vm201, %v196, %v198
    %v203 = vsel %vm201, %v198, %v196
    %v205 = vperm.slane %v185, 0
    %v206 = vperm.slane %v185, 1
    %v209 = vmul.f32 %v205, %v203
    %v210 = vmul.f32 %v206, %v202
    %v211 = vadd.f32 %v209, 0.0
    %v212 = vadd.f32 %v210, 0.0
    %s213 = scalar_lea.vmem [#allocation5], 1
    %v214 = vld [vmem:[%s213] ss:$8 sm:$0x3]
    %215 = vrot.lane.b32.xlu0 %v191, 50
    %v216 = vpop.permute.xlu0 %215
    %217 = vrot.lane.b32.xlu0 %v192, 50
    %v218 = vpop.permute.xlu0 %217
    %vm219 = vcmp.lt.s32.totalorder %v200, 50
    %v220 = vsel %vm219, %v216, %v218
    %v221 = vsel %vm219, %v218, %v216
    %v223 = vperm.slane %v214, 0
    %v224 = vperm.slane %v214, 1
    %v227 = vmul.f32 %v223, %v221
    %v228 = vmul.f32 %v224, %v220
    %v229 = vadd.f32 %v211, %v227
    %v230 = vadd.f32 %v212, %v228
    %s231 = scalar_lea.vmem [#allocation5], 2
    %v232 = vld [vmem:[%s231] ss:$8 sm:$0x3]
    %233 = vrot.lane.b32.xlu0 %v191, 49
    %v234 = vpop.permute.xlu0 %233
    %235 = vrot.lane.b32.xlu0 %v192, 49
    %v236 = vpop.permute.xlu0 %235
    %vm237 = vcmp.lt.s32.totalorder %v200, 49
    %v238 = vsel %vm237, %v234, %v236
    %v239 = vsel %vm237, %v236, %v234
    %v241 = vperm.slane %v232, 0
    %v242 = vperm.slane %v232, 1
    %v245 = vmul.f32 %v241, %v239
    %v246 = vmul.f32 %v242, %v238
    %v247 = vadd.f32 %v229, %v245
    %v248 = vadd.f32 %v230, %v246
    %s249 = scalar_lea.vmem [#allocation5], 3
    %v250 = vld [vmem:[%s249] ss:$8 sm:$0x3]
    %251 = vrot.lane.b32.xlu0 %v191, 48
    %v252 = vpop.permute.xlu0 %251
    %253 = vrot.lane.b32.xlu0 %v192, 48
    %v254 = vpop.permute.xlu0 %253
    %vm255 = vcmp.lt.s32.totalorder %v200, 48
    %v256 = vsel %vm255, %v252, %v254
    %v257 = vsel %vm255, %v254, %v252
    %v259 = vperm.slane %v250, 0
    %v260 = vperm.slane %v250, 1
    %v263 = vmul.f32 %v259, %v257
    %v264 = vmul.f32 %v260, %v256
    %v265 = vadd.f32 %v247, %v263
    %v266 = vadd.f32 %v248, %v264
    %s267 = scalar_lea.vmem [#allocation5], 4
    %v268 = vld [vmem:[%s267] ss:$8 sm:$0x3]
    %269 = vrot.lane.b32.xlu0 %v191, 47
    %v270 = vpop.permute.xlu0 %269
    %271 = vrot.lane.b32.xlu0 %v192, 47
    %v272 = vpop.permute.xlu0 %271
    %vm273 = vcmp.lt.s32.totalorder %v200, 47
    %v274 = vsel %vm273, %v270, %v272
    %v275 = vsel %vm273, %v272, %v270
    %v277 = vperm.slane %v268, 0
    %v278 = vperm.slane %v268, 1
    %v281 = vmul.f32 %v277, %v275
    %v282 = vmul.f32 %v278, %v274
    %v283 = vadd.f32 %v265, %v281
    %v284 = vadd.f32 %v266, %v282
    %s285 = scalar_lea.vmem [#allocation5], 5
    %v286 = vld [vmem:[%s285] ss:$8 sm:$0x3]
    %287 = vrot.lane.b32.xlu0 %v191, 46
    %v288 = vpop.permute.xlu0 %287
    %289 = vrot.lane.b32.xlu0 %v192, 46
    %v290 = vpop.permute.xlu0 %289
    %vm291 = vcmp.lt.s32.totalorder %v200, 46
    %v292 = vsel %vm291, %v288, %v290
    %v293 = vsel %vm291, %v290, %v288
    %v295 = vperm.slane %v286, 0
    %v296 = vperm.slane %v286, 1
    %v299 = vmul.f32 %v295, %v293
    %v300 = vmul.f32 %v296, %v292
    %v301 = vadd.f32 %v283, %v299
    %v302 = vadd.f32 %v284, %v300
    %s303 = scalar_lea.vmem [#allocation5], 6
    %v304 = vld [vmem:[%s303] ss:$8 sm:$0x3]
    %305 = vrot.lane.b32.xlu0 %v191, 45
    %v306 = vpop.permute.xlu0 %305
    %307 = vrot.lane.b32.xlu0 %v192, 45
    %v308 = vpop.permute.xlu0 %307
    %vm309 = vcmp.lt.s32.totalorder %v200, 45
    %v310 = vsel %vm309, %v306, %v308
    %v311 = vsel %vm309, %v308, %v306
    %v313 = vperm.slane %v304, 0
    %v314 = vperm.slane %v304, 1
    %v317 = vmul.f32 %v313, %v311
    %v318 = vmul.f32 %v314, %v310
    %v319 = vadd.f32 %v301, %v317
    %v320 = vadd.f32 %v302, %v318
    %s321 = scalar_lea.vmem [#allocation5], 7
    %v322 = vld [vmem:[%s321] ss:$8 sm:$0x3]
    %323 = vrot.lane.b32.xlu0 %v191, 35
    %v324 = vpop.permute.xlu0 %323
    %325 = vrot.lane.b32.xlu0 %v192, 35
    %v326 = vpop.permute.xlu0 %325
    %vm327 = vcmp.lt.s32.totalorder %v200, 35
    %v328 = vsel %vm327, %v324, %v326
    %v329 = vsel %vm327, %v326, %v324
    %v331 = vperm.slane %v322, 0
    %v332 = vperm.slane %v322, 1
    %v335 = vmul.f32 %v331, %v329
    %v336 = vmul.f32 %v332, %v328
    %v337 = vadd.f32 %v335, 0.0
    %v338 = vadd.f32 %v336, 0.0
    %s339 = scalar_lea.vmem [#allocation5], 16
    %v340 = vld [vmem:[%s339] ss:$8 sm:$0x3]
    %341 = vrot.lane.b32.xlu0 %v191, 34
    %v342 = vpop.permute.xlu0 %341
    %343 = vrot.lane.b32.xlu0 %v192, 34
    %v344 = vpop.permute.xlu0 %343
    %vm345 = vcmp.lt.s32.totalorder %v200, 34
    %v346 = vsel %vm345, %v342, %v344
    %v347 = vsel %vm345, %v344, %v342
    %v349 = vperm.slane %v340, 0
    %v350 = vperm.slane %v340, 1
    %v353 = vmul.f32 %v349, %v347
    %v354 = vmul.f32 %v350, %v346
    %v355 = vadd.f32 %v337, %v353
    %v356 = vadd.f32 %v338, %v354
    %s357 = scalar_lea.vmem [#allocation5], 17
    %v358 = vld [vmem:[%s357] ss:$8 sm:$0x3]
    %359 = vrot.lane.b32.xlu0 %v191, 33
    %v360 = vpop.permute.xlu0 %359
    %361 = vrot.lane.b32.xlu0 %v192, 33
    %v362 = vpop.permute.xlu0 %361
    %vm363 = vcmp.lt.s32.totalorder %v200, 33
    %v364 = vsel %vm363, %v360, %v362
    %v365 = vsel %vm363, %v362, %v360
    %v367 = vperm.slane %v358, 0
    %v368 = vperm.slane %v358, 1
    %v371 = vmul.f32 %v367, %v365
    %v372 = vmul.f32 %v368, %v364
    %v373 = vadd.f32 %v355, %v371
    %v374 = vadd.f32 %v356, %v372
    %s375 = scalar_lea.vmem [#allocation5], 18
    %v376 = vld [vmem:[%s375] ss:$8 sm:$0x3]
    %377 = vrot.lane.b32.xlu0 %v191, 32
    %v378 = vpop.permute.xlu0 %377
    %379 = vrot.lane.b32.xlu0 %v192, 32
    %v380 = vpop.permute.xlu0 %379
    %vm381 = vcmp.lt.s32.totalorder %v200, 32
    %v382 = vsel %vm381, %v378, %v380
    %v383 = vsel %vm381, %v380, %v378
    %v385 = vperm.slane %v376, 0
    %v386 = vperm.slane %v376, 1
    %v389 = vmul.f32 %v385, %v383
    %v390 = vmul.f32 %v386, %v382
    %v391 = vadd.f32 %v373, %v389
    %v392 = vadd.f32 %v374, %v390
    %s393 = scalar_lea.vmem [#allocation5], 19
    %v394 = vld [vmem:[%s393] ss:$8 sm:$0x3]
    %395 = vrot.lane.b32.xlu0 %v191, 31
    %v396 = vpop.permute.xlu0 %395
    %397 = vrot.lane.b32.xlu0 %v192, 31
    %v398 = vpop.permute.xlu0 %397
    %vm399 = vcmp.lt.s32.totalorder %v200, 31
    %v400 = vsel %vm399, %v396, %v398
    %v401 = vsel %vm399, %v398, %v396
    %v403 = vperm.slane %v394, 0
    %v404 = vperm.slane %v394, 1
    %v407 = vmul.f32 %v403, %v401
    %v408 = vmul.f32 %v404, %v400
    %v409 = vadd.f32 %v391, %v407
    %v410 = vadd.f32 %v392, %v408
    %s411 = scalar_lea.vmem [#allocation5], 20
    %v412 = vld [vmem:[%s411] ss:$8 sm:$0x3]
    %413 = vrot.lane.b32.xlu0 %v191, 30
    %v414 = vpop.permute.xlu0 %413
    %415 = vrot.lane.b32.xlu0 %v192, 30
    %v416 = vpop.permute.xlu0 %415
    %vm417 = vcmp.lt.s32.totalorder %v200, 30
    %v418 = vsel %vm417, %v414, %v416
    %v419 = vsel %vm417, %v416, %v414
    %v421 = vperm.slane %v412, 0
    %v422 = vperm.slane %v412, 1
    %v425 = vmul.f32 %v421, %v419
    %v426 = vmul.f32 %v422, %v418
    %v427 = vadd.f32 %v409, %v425
    %v428 = vadd.f32 %v410, %v426
    %s429 = scalar_lea.vmem [#allocation5], 21
    %v430 = vld [vmem:[%s429] ss:$8 sm:$0x3]
    %431 = vrot.lane.b32.xlu0 %v191, 29
    %v432 = vpop.permute.xlu0 %431
    %433 = vrot.lane.b32.xlu0 %v192, 29
    %v434 = vpop.permute.xlu0 %433
    %vm435 = vcmp.lt.s32.totalorder %v200, 29
    %v436 = vsel %vm435, %v432, %v434
    %v437 = vsel %vm435, %v434, %v432
    %v439 = vperm.slane %v430, 0
    %v440 = vperm.slane %v430, 1
    %v443 = vmul.f32 %v439, %v437
    %v444 = vmul.f32 %v440, %v436
    %v445 = vadd.f32 %v427, %v443
    %v446 = vadd.f32 %v428, %v444
    %s447 = scalar_lea.vmem [#allocation5], 22
    %v448 = vld [vmem:[%s447] ss:$8 sm:$0x3]
    %449 = vrot.lane.b32.xlu0 %v191, 19
    %v450 = vpop.permute.xlu0 %449
    %451 = vrot.lane.b32.xlu0 %v192, 19
    %v452 = vpop.permute.xlu0 %451
    %vm453 = vcmp.lt.s32.totalorder %v200, 19
    %v454 = vsel %vm453, %v450, %v452
    %v455 = vsel %vm453, %v452, %v450
    %v457 = vperm.slane %v448, 0
    %v458 = vperm.slane %v448, 1
    %v461 = vmul.f32 %v457, %v455
    %v462 = vmul.f32 %v458, %v454
    %v463 = vadd.f32 %v461, 0.0
    %v464 = vadd.f32 %v462, 0.0
    %s465 = scalar_lea.vmem [#allocation5], 23
    %v466 = vld [vmem:[%s465] ss:$8 sm:$0x3]
    %467 = vrot.lane.b32.xlu0 %v191, 18
    %v468 = vpop.permute.xlu0 %467
    %469 = vrot.lane.b32.xlu0 %v192, 18
    %v470 = vpop.permute.xlu0 %469
    %vm471 = vcmp.lt.s32.totalorder %v200, 18
    %v472 = vsel %vm471, %v468, %v470
    %v473 = vsel %vm471, %v470, %v468
    %v475 = vperm.slane %v466, 0
    %v476 = vperm.slane %v466, 1
    %v479 = vmul.f32 %v475, %v473
    %v480 = vmul.f32 %v476, %v472
    %v481 = vadd.f32 %v463, %v479
    %v482 = vadd.f32 %v464, %v480
    %s483 = scalar_lea.vmem [#allocation5], 32
    %v484 = vld [vmem:[%s483] ss:$8 sm:$0x3]
    %485 = vrot.lane.b32.xlu0 %v191, 17
    %v486 = vpop.permute.xlu0 %485
    %487 = vrot.lane.b32.xlu0 %v192, 17
    %v488 = vpop.permute.xlu0 %487
    %vm489 = vcmp.lt.s32.totalorder %v200, 17
    %v490 = vsel %vm489, %v486, %v488
    %v491 = vsel %vm489, %v488, %v486
    %v493 = vperm.slane %v484, 0
    %v494 = vperm.slane %v484, 1
    %v497 = vmul.f32 %v493, %v491
    %v498 = vmul.f32 %v494, %v490
    %v499 = vadd.f32 %v481, %v497
    %v500 = vadd.f32 %v482, %v498
    %s501 = scalar_lea.vmem [#allocation5], 33
    %v502 = vld [vmem:[%s501] ss:$8 sm:$0x3]
    %503 = vrot.lane.b32.xlu0 %v191, 16
    %v504 = vpop.permute.xlu0 %503
    %505 = vrot.lane.b32.xlu0 %v192, 16
    %v506 = vpop.permute.xlu0 %505
    %vm507 = vcmp.lt.s32.totalorder %v200, 16
    %v508 = vsel %vm507, %v504, %v506
    %v509 = vsel %vm507, %v506, %v504
    %v511 = vperm.slane %v502, 0
    %v512 = vperm.slane %v502, 1
    %v515 = vmul.f32 %v511, %v509
    %v516 = vmul.f32 %v512, %v508
    %v517 = vadd.f32 %v499, %v515
    %v518 = vadd.f32 %v500, %v516
    %s519 = scalar_lea.vmem [#allocation5], 34
    %v520 = vld [vmem:[%s519] ss:$8 sm:$0x3]
    %521 = vrot.lane.b32.xlu0 %v191, 15
    %v522 = vpop.permute.xlu0 %521
    %523 = vrot.lane.b32.xlu0 %v192, 15
    %v524 = vpop.permute.xlu0 %523
    %vm525 = vcmp.lt.s32.totalorder %v200, 15
    %v526 = vsel %vm525, %v522, %v524
    %v527 = vsel %vm525, %v524, %v522
    %v529 = vperm.slane %v520, 0
    %v530 = vperm.slane %v520, 1
    %v533 = vmul.f32 %v529, %v527
    %v534 = vmul.f32 %v530, %v526
    %v535 = vadd.f32 %v517, %v533
    %v536 = vadd.f32 %v518, %v534
    %s537 = scalar_lea.vmem [#allocation5], 35
    %v538 = vld [vmem:[%s537] ss:$8 sm:$0x3]
    %539 = vrot.lane.b32.xlu0 %v191, 14
    %v540 = vpop.permute.xlu0 %539
    %541 = vrot.lane.b32.xlu0 %v192, 14
    %v542 = vpop.permute.xlu0 %541
    %vm543 = vcmp.lt.s32.totalorder %v200, 14
    %v544 = vsel %vm543, %v540, %v542
    %v545 = vsel %vm543, %v542, %v540
    %v547 = vperm.slane %v538, 0
    %v548 = vperm.slane %v538, 1
    %v551 = vmul.f32 %v547, %v545
    %v552 = vmul.f32 %v548, %v544
    %v553 = vadd.f32 %v535, %v551
    %v554 = vadd.f32 %v536, %v552
    %s555 = scalar_lea.vmem [#allocation5], 36
    %v556 = vld [vmem:[%s555] ss:$8 sm:$0x3]
    %557 = vrot.lane.b32.xlu0 %v191, 13
    %v558 = vpop.permute.xlu0 %557
    %559 = vrot.lane.b32.xlu0 %v192, 13
    %v560 = vpop.permute.xlu0 %559
    %vm561 = vcmp.lt.s32.totalorder %v200, 13
    %v562 = vsel %vm561, %v558, %v560
    %v563 = vsel %vm561, %v560, %v558
    %v565 = vperm.slane %v556, 0
    %v566 = vperm.slane %v556, 1
    %v569 = vmul.f32 %v565, %v563
    %v570 = vmul.f32 %v566, %v562
    %v571 = vadd.f32 %v553, %v569
    %v572 = vadd.f32 %v554, %v570
    %s573 = scalar_lea.vmem [#allocation5], 37
    %v574 = vld [vmem:[%s573] ss:$8 sm:$0x3]
    %575 = vrot.lane.b32.xlu0 %v191, 3
    %v576 = vpop.permute.xlu0 %575
    %577 = vrot.lane.b32.xlu0 %v192, 3
    %v578 = vpop.permute.xlu0 %577
    %vm579 = vcmp.lt.s32.totalorder %v200, 3
    %v580 = vsel %vm579, %v576, %v578
    %v581 = vsel %vm579, %v578, %v576
    %v583 = vperm.slane %v574, 0
    %v584 = vperm.slane %v574, 1
    %v587 = vmul.f32 %v583, %v581
    %v588 = vmul.f32 %v584, %v580
    %v589 = vadd.f32 %v587, 0.0
    %v590 = vadd.f32 %v588, 0.0
    %s591 = scalar_lea.vmem [#allocation5], 38
    %v592 = vld [vmem:[%s591] ss:$8 sm:$0x3]
    %593 = vrot.lane.b32.xlu0 %v191, 2
    %v594 = vpop.permute.xlu0 %593
    %595 = vrot.lane.b32.xlu0 %v192, 2
    %v596 = vpop.permute.xlu0 %595
    %vm597 = vcmp.lt.s32.totalorder %v200, 2
    %v598 = vsel %vm597, %v594, %v596
    %v599 = vsel %vm597, %v596, %v594
    %v601 = vperm.slane %v592, 0
    %v602 = vperm.slane %v592, 1
    %v605 = vmul.f32 %v601, %v599
    %v606 = vmul.f32 %v602, %v598
    %v607 = vadd.f32 %v589, %v605
    %v608 = vadd.f32 %v590, %v606
    %s609 = scalar_lea.vmem [#allocation5], 39
    %v610 = vld [vmem:[%s609] ss:$8 sm:$0x3]
    %611 = vrot.lane.b32.xlu0 %v191, 1
    %v612 = vpop.permute.xlu0 %611
    %613 = vrot.lane.b32.xlu0 %v192, 1
    %v614 = vpop.permute.xlu0 %613
    %vm615 = vcmp.lt.s32.totalorder %v200, 1
    %v616 = vsel %vm615, %v612, %v614
    %v617 = vsel %vm615, %v614, %v612
    %v619 = vperm.slane %v610, 0
    %v620 = vperm.slane %v610, 1
    %v623 = vmul.f32 %v619, %v617
    %v624 = vmul.f32 %v620, %v616
    %v625 = vadd.f32 %v607, %v623
    %v626 = vadd.f32 %v608, %v624
    %s627 = scalar_lea.vmem [#allocation5], 48
    %v628 = vld [vmem:[%s627] ss:$8 sm:$0x3]
    %v630 = vperm.slane %v628, 0
    %v631 = vperm.slane %v628, 1
    %v634 = vmul.f32 %v630, %v191
    %v635 = vmul.f32 %v631, %v192
    %v636 = vadd.f32 %v625, %v634
    %v637 = vadd.f32 %v626, %v635
    %s638 = scalar_lea.vmem [#allocation5], 49
    %v639 = vld [vmem:[%s638] ss:$8 sm:$0x3]
    %640 = vrot.lane.b32.xlu0 %v191, 127
    %v641 = vpop.permute.xlu0 %640
    %642 = vrot.lane.b32.xlu0 %v192, 127
    %v643 = vpop.permute.xlu0 %642
    %vm644 = vcmp.lt.s32.totalorder %v200, 127
    %v645 = vsel %vm644, %v641, %v643
    %v646 = vsel %vm644, %v643, %v641
    %v648 = vperm.slane %v639, 0
    %v649 = vperm.slane %v639, 1
    %v652 = vmul.f32 %v648, %v645
    %v653 = vmul.f32 %v649, %v646
    %v654 = vadd.f32 %v636, %v652
    %v655 = vadd.f32 %v637, %v653
    %s656 = scalar_lea.vmem [#allocation5], 50
    %v657 = vld [vmem:[%s656] ss:$8 sm:$0x3]
    %658 = vrot.lane.b32.xlu0 %v191, 126
    %v659 = vpop.permute.xlu0 %658
    %660 = vrot.lane.b32.xlu0 %v192, 126
    %v661 = vpop.permute.xlu0 %660
    %vm662 = vcmp.lt.s32.totalorder %v200, 126
    %v663 = vsel %vm662, %v659, %v661
    %v664 = vsel %vm662, %v661, %v659
    %v666 = vperm.slane %v657, 0
    %v667 = vperm.slane %v657, 1
    %v670 = vmul.f32 %v666, %v663
    %v671 = vmul.f32 %v667, %v664
    %v672 = vadd.f32 %v654, %v670
    %v673 = vadd.f32 %v655, %v671
    %s674 = scalar_lea.vmem [#allocation5], 51
    %v675 = vld [vmem:[%s674] ss:$8 sm:$0x3]
    %676 = vrot.lane.b32.xlu0 %v191, 125
    %v677 = vpop.permute.xlu0 %676
    %678 = vrot.lane.b32.xlu0 %v192, 125
    %v679 = vpop.permute.xlu0 %678
    %vm680 = vcmp.lt.s32.totalorder %v200, 125
    %v681 = vsel %vm680, %v677, %v679
    %v682 = vsel %vm680, %v679, %v677
    %v684 = vperm.slane %v675, 0
    %v685 = vperm.slane %v675, 1
    %v688 = vmul.f32 %v684, %v681
    %v689 = vmul.f32 %v685, %v682
    %v690 = vadd.f32 %v672, %v688
    %v691 = vadd.f32 %v673, %v689
    %s692 = scalar_lea.vmem [#allocation5], 52
    %v693 = vld [vmem:[%s692] ss:$8 sm:$0x3]
    %694 = vrot.lane.b32.xlu0 %v191, 115
    %v695 = vpop.permute.xlu0 %694
    %696 = vrot.lane.b32.xlu0 %v192, 115
    %v697 = vpop.permute.xlu0 %696
    %vm698 = vcmp.lt.s32.totalorder %v200, 115
    %v699 = vsel %vm698, %v695, %v697
    %v700 = vsel %vm698, %v697, %v695
    %v702 = vperm.slane %v693, 0
    %v703 = vperm.slane %v693, 1
    %v706 = vmul.f32 %v702, %v699
    %v707 = vmul.f32 %v703, %v700
    %v708 = vadd.f32 %v706, 0.0
    %v709 = vadd.f32 %v707, 0.0
    %s710 = scalar_lea.vmem [#allocation5], 53
    %v711 = vld [vmem:[%s710] ss:$8 sm:$0x3]
    %712 = vrot.lane.b32.xlu0 %v191, 114
    %v713 = vpop.permute.xlu0 %712
    %714 = vrot.lane.b32.xlu0 %v192, 114
    %v715 = vpop.permute.xlu0 %714
    %vm716 = vcmp.lt.s32.totalorder %v200, 114
    %v717 = vsel %vm716, %v713, %v715
    %v718 = vsel %vm716, %v715, %v713
    %v720 = vperm.slane %v711, 0
    %v721 = vperm.slane %v711, 1
    %v724 = vmul.f32 %v720, %v717
    %v725 = vmul.f32 %v721, %v718
    %v726 = vadd.f32 %v708, %v724
    %v727 = vadd.f32 %v709, %v725
    %s728 = scalar_lea.vmem [#allocation5], 54
    %v729 = vld [vmem:[%s728] ss:$8 sm:$0x3]
    %730 = vrot.lane.b32.xlu0 %v191, 113
    %v731 = vpop.permute.xlu0 %730
    %732 = vrot.lane.b32.xlu0 %v192, 113
    %v733 = vpop.permute.xlu0 %732
    %vm734 = vcmp.lt.s32.totalorder %v200, 113
    %v735 = vsel %vm734, %v731, %v733
    %v736 = vsel %vm734, %v733, %v731
    %v738 = vperm.slane %v729, 0
    %v739 = vperm.slane %v729, 1
    %v742 = vmul.f32 %v738, %v735
    %v743 = vmul.f32 %v739, %v736
    %v744 = vadd.f32 %v726, %v742
    %v745 = vadd.f32 %v727, %v743
    %s746 = scalar_lea.vmem [#allocation5], 55
    %v747 = vld [vmem:[%s746] ss:$8 sm:$0x3]
    %748 = vrot.lane.b32.xlu0 %v191, 112
    %v749 = vpop.permute.xlu0 %748
    %750 = vrot.lane.b32.xlu0 %v192, 112
    %v751 = vpop.permute.xlu0 %750
    %vm752 = vcmp.lt.s32.totalorder %v200, 112
    %v753 = vsel %vm752, %v749, %v751
    %v754 = vsel %vm752, %v751, %v749
    %v756 = vperm.slane %v747, 0
    %v757 = vperm.slane %v747, 1
    %v760 = vmul.f32 %v756, %v753
    %v761 = vmul.f32 %v757, %v754
    %v762 = vadd.f32 %v744, %v760
    %v763 = vadd.f32 %v745, %v761
    %s764 = scalar_lea.vmem [#allocation5], 64
    %v765 = vld [vmem:[%s764] ss:$8 sm:$0x3]
    %766 = vrot.lane.b32.xlu0 %v191, 111
    %v767 = vpop.permute.xlu0 %766
    %768 = vrot.lane.b32.xlu0 %v192, 111
    %v769 = vpop.permute.xlu0 %768
    %vm770 = vcmp.lt.s32.totalorder %v200, 111
    %v771 = vsel %vm770, %v767, %v769
    %v772 = vsel %vm770, %v769, %v767
    %v774 = vperm.slane %v765, 0
    %v775 = vperm.slane %v765, 1
    %v778 = vmul.f32 %v774, %v771
    %v779 = vmul.f32 %v775, %v772
    %v780 = vadd.f32 %v762, %v778
    %v781 = vadd.f32 %v763, %v779
    %s782 = scalar_lea.vmem [#allocation5], 65
    %v783 = vld [vmem:[%s782] ss:$8 sm:$0x3]
    %784 = vrot.lane.b32.xlu0 %v191, 110
    %v785 = vpop.permute.xlu0 %784
    %786 = vrot.lane.b32.xlu0 %v192, 110
    %v787 = vpop.permute.xlu0 %786
    %vm788 = vcmp.lt.s32.totalorder %v200, 110
    %v789 = vsel %vm788, %v785, %v787
    %v790 = vsel %vm788, %v787, %v785
    %v792 = vperm.slane %v783, 0
    %v793 = vperm.slane %v783, 1
    %v796 = vmul.f32 %v792, %v789
    %v797 = vmul.f32 %v793, %v790
    %v798 = vadd.f32 %v780, %v796
    %v799 = vadd.f32 %v781, %v797
    %s800 = scalar_lea.vmem [#allocation5], 66
    %v801 = vld [vmem:[%s800] ss:$8 sm:$0x3]
    %802 = vrot.lane.b32.xlu0 %v191, 109
    %v803 = vpop.permute.xlu0 %802
    %804 = vrot.lane.b32.xlu0 %v192, 109
    %v805 = vpop.permute.xlu0 %804
    %vm806 = vcmp.lt.s32.totalorder %v200, 109
    %v807 = vsel %vm806, %v803, %v805
    %v808 = vsel %vm806, %v805, %v803
    %v810 = vperm.slane %v801, 0
    %v811 = vperm.slane %v801, 1
    %v814 = vmul.f32 %v810, %v807
    %v815 = vmul.f32 %v811, %v808
    %v816 = vadd.f32 %v798, %v814
    %v817 = vadd.f32 %v799, %v815
    %s818 = scalar_lea.vmem [#allocation5], 67
    %v819 = vld [vmem:[%s818] ss:$8 sm:$0x3]
    %820 = vrot.lane.b32.xlu0 %v191, 99
    %v821 = vpop.permute.xlu0 %820
    %822 = vrot.lane.b32.xlu0 %v192, 99
    %v823 = vpop.permute.xlu0 %822
    %vm824 = vcmp.lt.s32.totalorder %v200, 99
    %v825 = vsel %vm824, %v821, %v823
    %v826 = vsel %vm824, %v823, %v821
    %v828 = vperm.slane %v819, 0
    %v829 = vperm.slane %v819, 1
    %v832 = vmul.f32 %v828, %v825
    %v833 = vmul.f32 %v829, %v826
    %v834 = vadd.f32 %v832, 0.0
    %v835 = vadd.f32 %v833, 0.0
    %s836 = scalar_lea.vmem [#allocation5], 68
    %v837 = vld [vmem:[%s836] ss:$8 sm:$0x3]
    %838 = vrot.lane.b32.xlu0 %v191, 98
    %v839 = vpop.permute.xlu0 %838
    %840 = vrot.lane.b32.xlu0 %v192, 98
    %v841 = vpop.permute.xlu0 %840
    %vm842 = vcmp.lt.s32.totalorder %v200, 98
    %v843 = vsel %vm842, %v839, %v841
    %v844 = vsel %vm842, %v841, %v839
    %v846 = vperm.slane %v837, 0
    %v847 = vperm.slane %v837, 1
    %v850 = vmul.f32 %v846, %v843
    %v851 = vmul.f32 %v847, %v844
    %v852 = vadd.f32 %v834, %v850
    %v853 = vadd.f32 %v835, %v851
    %s854 = scalar_lea.vmem [#allocation5], 69
    %v855 = vld [vmem:[%s854] ss:$8 sm:$0x3]
    %856 = vrot.lane.b32.xlu0 %v191, 97
    %v857 = vpop.permute.xlu0 %856
    %858 = vrot.lane.b32.xlu0 %v192, 97
    %v859 = vpop.permute.xlu0 %858
    %vm860 = vcmp.lt.s32.totalorder %v200, 97
    %v861 = vsel %vm860, %v857, %v859
    %v862 = vsel %vm860, %v859, %v857
    %v864 = vperm.slane %v855, 0
    %v865 = vperm.slane %v855, 1
    %v868 = vmul.f32 %v864, %v861
    %v869 = vmul.f32 %v865, %v862
    %v870 = vadd.f32 %v852, %v868
    %v871 = vadd.f32 %v853, %v869
    %s872 = scalar_lea.vmem [#allocation5], 70
    %v873 = vld [vmem:[%s872] ss:$8 sm:$0x3]
    %874 = vrot.lane.b32.xlu0 %v191, 96
    %v875 = vpop.permute.xlu0 %874
    %876 = vrot.lane.b32.xlu0 %v192, 96
    %v877 = vpop.permute.xlu0 %876
    %vm878 = vcmp.lt.s32.totalorder %v200, 96
    %v879 = vsel %vm878, %v875, %v877
    %v880 = vsel %vm878, %v877, %v875
    %v882 = vperm.slane %v873, 0
    %v883 = vperm.slane %v873, 1
    %v886 = vmul.f32 %v882, %v879
    %v887 = vmul.f32 %v883, %v880
    %v888 = vadd.f32 %v870, %v886
    %v889 = vadd.f32 %v871, %v887
    %s890 = scalar_lea.vmem [#allocation5], 71
    %v891 = vld [vmem:[%s890] ss:$8 sm:$0x3]
    %892 = vrot.lane.b32.xlu0 %v191, 95
    %v893 = vpop.permute.xlu0 %892
    %894 = vrot.lane.b32.xlu0 %v192, 95
    %v895 = vpop.permute.xlu0 %894
    %vm896 = vcmp.lt.s32.totalorder %v200, 95
    %v897 = vsel %vm896, %v893, %v895
    %v898 = vsel %vm896, %v895, %v893
    %v900 = vperm.slane %v891, 0
    %v901 = vperm.slane %v891, 1
    %v904 = vmul.f32 %v900, %v897
    %v905 = vmul.f32 %v901, %v898
    %v906 = vadd.f32 %v888, %v904
    %v907 = vadd.f32 %v889, %v905
    %s908 = scalar_lea.vmem [#allocation5], 80
    %v909 = vld [vmem:[%s908] ss:$8 sm:$0x3]
    %910 = vrot.lane.b32.xlu0 %v191, 94
    %v911 = vpop.permute.xlu0 %910
    %912 = vrot.lane.b32.xlu0 %v192, 94
    %v913 = vpop.permute.xlu0 %912
    %vm914 = vcmp.lt.s32.totalorder %v200, 94
    %v915 = vsel %vm914, %v911, %v913
    %v916 = vsel %vm914, %v913, %v911
    %v918 = vperm.slane %v909, 0
    %v919 = vperm.slane %v909, 1
    %v922 = vmul.f32 %v918, %v915
    %v923 = vmul.f32 %v919, %v916
    %v924 = vadd.f32 %v906, %v922
    %v925 = vadd.f32 %v907, %v923
    %s926 = scalar_lea.vmem [#allocation5], 81
    %v927 = vld [vmem:[%s926] ss:$8 sm:$0x3]
    %928 = vrot.lane.b32.xlu0 %v191, 93
    %v929 = vpop.permute.xlu0 %928
    %930 = vrot.lane.b32.xlu0 %v192, 93
    %v931 = vpop.permute.xlu0 %930
    %vm932 = vcmp.lt.s32.totalorder %v200, 93
    %v933 = vsel %vm932, %v929, %v931
    %v934 = vsel %vm932, %v931, %v929
    %v936 = vperm.slane %v927, 0
    %v937 = vperm.slane %v927, 1
    %v940 = vmul.f32 %v936, %v933
    %v941 = vmul.f32 %v937, %v934
    %v942 = vadd.f32 %v924, %v940
    %v943 = vadd.f32 %v925, %v941
    %s944 = scalar_lea.vmem [#allocation5], 82
    %v945 = vld [vmem:[%s944] ss:$8 sm:$0x3]
    %946 = vrot.lane.b32.xlu0 %v191, 83
    %v947 = vpop.permute.xlu0 %946
    %948 = vrot.lane.b32.xlu0 %v192, 83
    %v949 = vpop.permute.xlu0 %948
    %vm950 = vcmp.lt.s32.totalorder %v200, 83
    %v951 = vsel %vm950, %v947, %v949
    %v952 = vsel %vm950, %v949, %v947
    %v954 = vperm.slane %v945, 0
    %v955 = vperm.slane %v945, 1
    %v958 = vmul.f32 %v954, %v951
    %v959 = vmul.f32 %v955, %v952
    %v960 = vadd.f32 %v958, 0.0
    %v961 = vadd.f32 %v959, 0.0
    %s962 = scalar_lea.vmem [#allocation5], 83
    %v963 = vld [vmem:[%s962] ss:$8 sm:$0x3]
    %964 = vrot.lane.b32.xlu0 %v191, 82
    %v965 = vpop.permute.xlu0 %964
    %966 = vrot.lane.b32.xlu0 %v192, 82
    %v967 = vpop.permute.xlu0 %966
    %vm968 = vcmp.lt.s32.totalorder %v200, 82
    %v969 = vsel %vm968, %v965, %v967
    %v970 = vsel %vm968, %v967, %v965
    %v972 = vperm.slane %v963, 0
    %v973 = vperm.slane %v963, 1
    %v976 = vmul.f32 %v972, %v969
    %v977 = vmul.f32 %v973, %v970
    %v978 = vadd.f32 %v960, %v976
    %v979 = vadd.f32 %v961, %v977
    %s980 = scalar_lea.vmem [#allocation5], 84
    %v981 = vld [vmem:[%s980] ss:$8 sm:$0x3]
    %982 = vrot.lane.b32.xlu0 %v191, 81
    %v983 = vpop.permute.xlu0 %982
    %984 = vrot.lane.b32.xlu0 %v192, 81
    %v985 = vpop.permute.xlu0 %984
    %vm986 = vcmp.lt.s32.totalorder %v200, 81
    %v987 = vsel %vm986, %v983, %v985
    %v988 = vsel %vm986, %v985, %v983
    %v990 = vperm.slane %v981, 0
    %v991 = vperm.slane %v981, 1
    %v994 = vmul.f32 %v990, %v987
    %v995 = vmul.f32 %v991, %v988
    %v996 = vadd.f32 %v978, %v994
    %v997 = vadd.f32 %v979, %v995
    %s998 = scalar_lea.vmem [#allocation5], 85
    %v999 = vld [vmem:[%s998] ss:$8 sm:$0x3]
    %1000 = vrot.lane.b32.xlu0 %v191, 80
    %v1001 = vpop.permute.xlu0 %1000
    %1002 = vrot.lane.b32.xlu0 %v192, 80
    %v1003 = vpop.permute.xlu0 %1002
    %vm1004 = vcmp.lt.s32.totalorder %v200, 80
    %v1005 = vsel %vm1004, %v1001, %v1003
    %v1006 = vsel %vm1004, %v1003, %v1001
    %v1008 = vperm.slane %v999, 0
    %v1009 = vperm.slane %v999, 1
    %v1012 = vmul.f32 %v1008, %v1005
    %v1013 = vmul.f32 %v1009, %v1006
    %v1014 = vadd.f32 %v996, %v1012
    %v1015 = vadd.f32 %v997, %v1013
    %s1016 = scalar_lea.vmem [#allocation5], 86
    %v1017 = vld [vmem:[%s1016] ss:$8 sm:$0x3]
    %1018 = vrot.lane.b32.xlu0 %v191, 79
    %v1019 = vpop.permute.xlu0 %1018
    %1020 = vrot.lane.b32.xlu0 %v192, 79
    %v1021 = vpop.permute.xlu0 %1020
    %vm1022 = vcmp.lt.s32.totalorder %v200, 79
    %v1023 = vsel %vm1022, %v1019, %v1021
    %v1024 = vsel %vm1022, %v1021, %v1019
    %v1026 = vperm.slane %v1017, 0
    %v1027 = vperm.slane %v1017, 1
    %v1030 = vmul.f32 %v1026, %v1023
    %v1031 = vmul.f32 %v1027, %v1024
    %v1032 = vadd.f32 %v1014, %v1030
    %v1033 = vadd.f32 %v1015, %v1031
    %s1034 = scalar_lea.vmem [#allocation5], 87
    %v1035 = vld [vmem:[%s1034] ss:$8 sm:$0x3]
    %1036 = vrot.lane.b32.xlu0 %v191, 78
    %v1037 = vpop.permute.xlu0 %1036
    %1038 = vrot.lane.b32.xlu0 %v192, 78
    %v1039 = vpop.permute.xlu0 %1038
    %vm1040 = vcmp.lt.s32.totalorder %v200, 78
    %v1041 = vsel %vm1040, %v1037, %v1039
    %v1042 = vsel %vm1040, %v1039, %v1037
    %v1044 = vperm.slane %v1035, 0
    %v1045 = vperm.slane %v1035, 1
    %v1048 = vmul.f32 %v1044, %v1041
    %v1049 = vmul.f32 %v1045, %v1042
    %v1050 = vadd.f32 %v1032, %v1048
    %v1051 = vadd.f32 %v1033, %v1049
    %s1052 = scalar_lea.vmem [#allocation5], 96
    %v1053 = vld [vmem:[%s1052] ss:$8 sm:$0x3]
    %1054 = vrot.lane.b32.xlu0 %v191, 77
    %v1055 = vpop.permute.xlu0 %1054
    %1056 = vrot.lane.b32.xlu0 %v192, 77
    %v1057 = vpop.permute.xlu0 %1056
    %vm1058 = vcmp.lt.s32.totalorder %v200, 77
    %v1059 = vsel %vm1058, %v1055, %v1057
    %v1060 = vsel %vm1058, %v1057, %v1055
    %v1062 = vperm.slane %v1053, 0
    %v1063 = vperm.slane %v1053, 1
    %v1066 = vmul.f32 %v1062, %v1059
    %v1067 = vmul.f32 %v1063, %v1060
    %v1068 = vadd.f32 %v1050, %v1066
    %v1069 = vadd.f32 %v1051, %v1067
    %v1070 = vadd.f32 %v319, %v445
    %v1071 = vadd.f32 %v320, %v446
    %v1072 = vadd.f32 %v571, %v690
    %v1073 = vadd.f32 %v572, %v691
    %v1074 = vadd.f32 %v1070, %v1072
    %v1075 = vadd.f32 %v1071, %v1073
    %v1076 = vadd.f32 %v816, %v942
    %v1077 = vadd.f32 %v817, %v943
    %v1078 = vadd.f32 %v1076, %v1068
    %v1079 = vadd.f32 %v1077, %v1069
    %v1080 = vadd.f32 %v1074, %v1078
    %v1081 = vadd.f32 %v1075, %v1079
    %v1082 = vmax.f32 %v1080, -30.0
    %v1083 = vmax.f32 %v1081, -30.0
    %v1084 = vsub.f32 0.0, %v1082
    %v1085 = vsub.f32 0.0, %v1083
    %v1086 = vmul.f32 %v1084, 1.442695
    %v1087 = vpow.pop %v1086
    %v1088 = vmul.f32 %v1085, 1.442695
    %v1089 = vpow.pop %v1088
    %v1090 = vadd.f32 %v1087, 1.0
    %v1091 = vadd.f32 %v1089, 1.0
    %v1092 = vrcp.pop %v1090
    %v1093 = vrcp.pop %v1091
    %v1096 = vrot.slane %v1093, 7
    %vm1097 = vcmask 1040384
    %v1098 = vsel %vm1097, %v1092, %v1096
    %v1099 = vsel %vm190, %v1092, %v1096
    %v1100 = vrot.slane %v1099, 1
    %v1101 = vperm.slane %v1098, 0
    %v1102 = vperm.slane %v1098, 1
    %v1103 = vperm.slane %v1100, 0
    %v1104 = vperm.slane %v1100, 1
    %v1105 = vrot.slane %v1102, 4
    %v1106 = vrot.slane %v1104, 4
    %v1107 = vsel %vm65, %v1101, %v1105
    %v1108 = vsel %vm65, %v1103, %v1106
    %v1111 = vmul.f32 %v131, %v1107
    %v1112 = vmul.f32 %v132, %v1108
    %1113 = vst [vmem:[#allocation7] sm:$0xff] %v1111
    %1114 = vst [vmem:[#allocation7 + $0x8] sm:$0xff] %v1112
    // Predicated region
    $region26: #{tpu_custom_call.1} parent=1 // pred_check
      _
    $region27: #{tpu_custom_call.1} parent=1 // pred_check_branch
      %1116 = sbr.rel (0) target = $region29
    $region28: #{tpu_custom_call.1} parent=1 // pred_region
      %1118 = vsyncadd [#allocation4], 0
      %s1119 = sshll.u32 [#allocation7], 4
      %s1120 = int_to_ptr.vmem [resolvable:$true] %s1119
      %s1121 = sshll.u32 %s4, 4
      %s1122 = int_to_ptr.hbm [resolvable:$true] %s1121
      %1127 = dma.vmem_to_hbm [thread:$0]  %s1120, 256, %s1122, [#allocation4], 128, 128, 8
    $region29: #{tpu_custom_call.1} parent=1 // pred_fallthru
      _
    // Predicated region
    $region30: #{tpu_custom_call.1} parent=1 // pred_check
      _
    $region31: #{tpu_custom_call.1} parent=1 // pred_check_branch
      %1129 = sbr.rel (0) target = $region33
    $region32: #{tpu_custom_call.1} parent=1 // pred_region
      %1131 = dma.done [#allocation4], 256
    $region33: #{tpu_custom_call.1} parent=1 // pred_fallthru
      _
    %1132 = vsyncpa [#allocation3], 1
    %1133 = vsyncpa [#allocation6], 1
    %1134 = vsyncpa [#allocation4], 1

</llo_original>
